<compile_context>
chip_gen: v5e
topology: v5e:2x2
jax: 0.10.0
libtpu: 0.0.40
codegen_flags: <defaults>
</compile_context>

<pallas_src>
import math
import functools

import jax
import jax.numpy as jnp
from jax.experimental import pallas as pl
from jax.experimental.pallas import tpu as pltpu


def _round_up(x, m):
    return ((x + m - 1) // m) * m


def _pick_tile(size, unit, cap):
    """Pick tile: multiple of `unit`, divides the minimally padded size, <= cap."""
    padded = _round_up(size, unit)
    nblk = padded // unit
    cap_units = max(1, cap // unit)
    best = 1
    for d in range(min(nblk, cap_units), 0, -1):
        if nblk % d == 0:
            best = d
            break
    tile = best * unit
    return tile, padded


def _vmem_capacity_bytes():
    try:
        return int(pltpu.get_tpu_info().vmem_capacity_bytes)
    except Exception:
        return 64 * 1024 * 1024  # conservative fallback (v7x per-TC VMEM)


# --------------------------------------------------------------------------
# Fused GEMM + BN(scale,bias) + (residual | fused 1x1-conv shortcut) + ReLU
# --------------------------------------------------------------------------
def _make_fused_kernel(nk, apply_relu, has_residual, has_shortcut):
    def epilogue(acc, scale_ref, bias_ref, extra):
        r = acc * scale_ref[...] + bias_ref[...]
        if has_shortcut:
            xs_ref, wsm_ref, ss_ref, sb_ref = extra
            sc = jnp.dot(xs_ref[...], wsm_ref[...],
                         preferred_element_type=jnp.float32)
            r = r + (sc * ss_ref[...] + sb_ref[...])
        elif has_residual:
            (res_ref,) = extra
            r = r + res_ref[...]
        if apply_relu:
            r = jnp.maximum(r, 0.0)
        return r

    def kernel(*refs):
        a_ref, b_ref, scale_ref, bias_ref = refs[:4]
        out_ref = refs[-1]
        extra = refs[4:-1]

        # bf16 x bf16 -> f32 accumulate on the MXU.
        prod = jnp.dot(a_ref[...], b_ref[...],
                       preferred_element_type=jnp.float32)

        if nk == 1:
            out_ref[...] = epilogue(prod, scale_ref, bias_ref, extra)
        else:
            k = pl.program_id(2)

            @pl.when(k == 0)
            def _():
                out_ref[...] = prod          # no zero-fill + reload

            @pl.when(jnp.logical_and(k > 0, k < nk - 1))
            def _():
                out_ref[...] += prod

            @pl.when(k == nk - 1)
            def _():
                acc = out_ref[...] + prod    # single read, epilogue, single store
                out_ref[...] = epilogue(acc, scale_ref, bias_ref, extra)

    return kernel


def _fused_matmul_bn_act(a, b, scale, bias, residual=None, shortcut=None,
                         *, apply_relu):
    """out = act((a @ b) * scale + bias [+ residual | + (xs @ wsm) * ss + sb])."""
    M, K = a.shape
    K2, N = b.shape
    assert K == K2
    has_res = residual is not None
    has_sc = shortcut is not None
    assert not (has_res and has_sc)

    vmem = _vmem_capacity_bytes()
    big_chip = vmem >= 96 * 1024 * 1024            # v5e/v6e: 128 MiB; v7x: 64 MiB/TC
    vmem_limit = min(int(vmem * 0.75), 100 * 1024 * 1024)

    # Tile selection: lane-dense, divisor-of-padded-size (no over-padding of K).
    tm_cap = 1024 if big_chip else 512
    tm, Mp = _pick_tile(M, 16, tm_cap)             # 16: bf16 sublane packing
    tn, Np = _pick_tile(N, 128, 1024)
    tk, Kp = _pick_tile(K, 128, 640)

    # v7x has 2 TensorCores sharding the "parallel" axes: keep >= 2 i tiles.
    if (not big_chip) and Mp // tm == 1 and Mp >= 32:
        tm, Mp = _pick_tile(M, 16, max(16, tm // 2))

    if has_sc:
        xs, wsm, ss, sb = shortcut
        Ksc = xs.shape[1]
        Kscp = _round_up(Ksc, 128)
    else:
        Kscp = 0

    def footprint(tm_):
        by = 2 * tm_ * tk * 2          # A tiles, bf16, double-buffered
        by += 2 * tk * tn * 2          # B tiles, bf16
        by += 2 * tm_ * tn * 4         # resident f32 output block (conservative x2)
        if has_res:
            by += 2 * tm_ * tn * 4
        if has_sc:
            by += 2 * tm_ * Kscp * 2 + 2 * Kscp * tn * 2
        by += 8 * tn * 4               # scale/bias rows
        return by

    while footprint(tm) > int(0.6 * vmem_limit) and tm > 16:
        tm = max(16, _round_up(tm // 2, 16))
        Mp = _round_up(M, tm)

    f32, bf16 = jnp.float32, jnp.bfloat16
    a_p = jnp.pad(a.astype(bf16), ((0, Mp - M), (0, Kp - K)))
    b_p = jnp.pad(b.astype(bf16), ((0, Kp - K), (0, Np - N)))
    scale_p = jnp.pad(scale.astype(f32).reshape(1, N), ((0, 0), (0, Np - N)))
    bias_p = jnp.pad(bias.astype(f32).reshape(1, N), ((0, 0), (0, Np - N)))

    operands = [a_p, b_p, scale_p, bias_p]
    in_specs = [
        pl.BlockSpec((tm, tk), lambda i, j, k: (i, k)),   # im2col activations (bf16)
        pl.BlockSpec((tk, tn), lambda i, j, k: (k, j)),   # weights, (K, N) layout (bf16)
        pl.BlockSpec((1, tn), lambda i, j, k: (0, j)),    # folded BN scale
        pl.BlockSpec((1, tn), lambda i, j, k: (0, j)),    # folded BN bias
    ]
    if has_sc:
        xs_p = jnp.pad(xs.astype(bf16), ((0, Mp - M), (0, Kscp - Ksc)))
        wsm_p = jnp.pad(wsm.astype(bf16), ((0, Kscp - Ksc), (0, Np - N)))
        ss_p = jnp.pad(ss.astype(f32).reshape(1, N), ((0, 0), (0, Np - N)))
        sb_p = jnp.pad(sb.astype(f32).reshape(1, N), ((0, 0), (0, Np - N)))
        operands += [xs_p, wsm_p, ss_p, sb_p]
        in_specs += [
            pl.BlockSpec((tm, Kscp), lambda i, j, k: (i, 0)),   # shortcut input
            pl.BlockSpec((Kscp, tn), lambda i, j, k: (0, j)),   # shortcut weights
            pl.BlockSpec((1, tn), lambda i, j, k: (0, j)),      # shortcut BN scale
            pl.BlockSpec((1, tn), lambda i, j, k: (0, j)),      # shortcut BN bias
        ]
    elif has_res:
        # Identity residual stays f32 so the add is exact.
        res_p = jnp.pad(residual.astype(f32), ((0, Mp - M), (0, Np - N)))
        operands.append(res_p)
        in_specs.append(pl.BlockSpec((tm, tn), lambda i, j, k: (i, j)))

    grid = (Mp // tm, Np // tn, Kp // tk)
    nk = grid[2]

    flops = 2 * Mp * Np * Kp + (2 * Mp * Np * Kscp if has_sc else 0)
    bytes_accessed = (2 * (Mp * Kp + Kp * Np) + 4 * Mp * Np + 8 * Np
                      + (4 * Mp * Np if has_res else 0)
                      + (2 * (Mp * Kscp + Kscp * Np) + 8 * Np if has_sc else 0))
    cost = pl.CostEstimate(flops=flops, transcendentals=0,
                           bytes_accessed=bytes_accessed)

    out = pl.pallas_call(
        _make_fused_kernel(nk, apply_relu, has_res, has_sc),
        out_shape=jax.ShapeDtypeStruct((Mp, Np), f32),
        grid_spec=pltpu.PrefetchScalarGridSpec(
            num_scalar_prefetch=0,
            grid=grid,
            in_specs=in_specs,
            out_specs=pl.BlockSpec((tm, tn), lambda i, j, k: (i, j)),
        ),
        compiler_params=pltpu.CompilerParams(
            dimension_semantics=("parallel", "parallel", "arbitrary"),
            vmem_limit_bytes=vmem_limit,
        ),
        cost_estimate=cost,
    )(*operands)

    return out[:M, :N]


# --------------------------------------------------------------------------
# BasicBlock forward (im2col + fused kernels)
# --------------------------------------------------------------------------
def _fold_bn(gamma, beta, mean, var, eps):
    scale = gamma / jnp.sqrt(var + eps)
    bias = beta - mean * scale
    return scale, bias


def _im2col_3x3(x_nhwc, stride):
    """3x3, pad=1, stride=s patch extraction -> (N*Ho*Wo, 9*C)."""
    N, H, W, C = x_nhwc.shape
    Ho = (H + 2 - 3) // stride + 1
    Wo = (W + 2 - 3) // stride + 1
    xp = jnp.pad(x_nhwc, ((0, 0), (1, 1), (1, 1), (0, 0)))
    taps = []
    for dy in range(3):
        for dx in range(3):
            sl = jax.lax.slice(
                xp,
                (0, dy, dx, 0),
                (N, dy + stride * (Ho - 1) + 1, dx + stride * (Wo - 1) + 1, C),
                (1, stride, stride, 1),
            )
            taps.append(sl)
    patches = jnp.concatenate(taps, axis=-1)  # (N, Ho, Wo, 9*C), tap order (dy, dx, ci)
    return patches.reshape(N * Ho * Wo, 9 * C), (Ho, Wo)


@functools.partial(jax.jit, static_argnames=("stride", "eps"))
def basic_block_forward(x_nchw, params, stride=1, eps=1e-5):
    # TODO(synk): keeps the module's NCHW interface; if the surrounding model is
    # NHWC these two transposes (full HBM copies) can be dropped.
    x = jnp.transpose(x_nchw, (0, 2, 3, 1)).astype(jnp.float32)  # NHWC: channels on lanes
    N, H, W, Cin = x.shape
    planes = params["conv1_w"].shape[0]

    s1, b1 = _fold_bn(params["bn1_gamma"], params["bn1_beta"],
                      params["bn1_mean"], params["bn1_var"], eps)
    s2, b2 = _fold_bn(params["bn2_gamma"], params["bn2_beta"],
                      params["bn2_mean"], params["bn2_var"], eps)

    # --- conv1 (3x3, stride) + bn1 + relu -------------------------------
    p1, (Ho, Wo) = _im2col_3x3(x, stride)
    # torch weight (Co, Ci, 3, 3) -> (dy, dx, ci, Co) -> (9*Ci, Co): matches patch cols.
    w1m = jnp.transpose(params["conv1_w"], (2, 3, 1, 0)).reshape(9 * Cin, planes)
    h = _fused_matmul_bn_act(p1, w1m, s1, b1, apply_relu=True)  # (N*Ho*Wo, planes) f32

    # --- conv2 (3x3, stride 1) + bn2 + shortcut + relu --------------------
    h_img = h.reshape(N, Ho, Wo, planes)
    p2, _ = _im2col_3x3(h_img, 1)
    w2m = jnp.transpose(params["conv2_w"], (2, 3, 1, 0)).reshape(9 * planes, planes)

    if stride != 1 or Cin != planes:
        # Projection shortcut (1x1 conv + BN) fused into the conv2 epilogue.
        xs = x[:, ::stride, ::stride, :].reshape(N * Ho * Wo, Cin)
        wsm = jnp.transpose(params["sc_conv_w"].reshape(planes, Cin), (1, 0))
        ss, bs = _fold_bn(params["sc_bn_gamma"], params["sc_bn_beta"],
                          params["sc_bn_mean"], params["sc_bn_var"], eps)
        out = _fused_matmul_bn_act(p2, w2m, s2, b2,
                                   shortcut=(xs, wsm, ss, bs), apply_relu=True)
    else:
        sc = x.reshape(N * H * W, Cin)     # identity residual, f32
        out = _fused_matmul_bn_act(p2, w2m, s2, b2, residual=sc, apply_relu=True)

    out = out.reshape(N, Ho, Wo, planes)
    return jnp.transpose(out, (0, 3, 1, 2))  # back to NCHW


# --------------------------------------------------------------------------
# Pure-JAX reference (conv inputs rounded to bf16 like the kernel) and demo
# --------------------------------------------------------------------------
def _ref_forward(x, params, stride, eps=1e-5):
    bf = lambda t: t.astype(jnp.bfloat16).astype(jnp.float32)

    def conv(x, w, s, p):
        return jax.lax.conv_general_dilated(
            bf(x), bf(w), window_strides=(s, s), padding=[(p, p), (p, p)],
            dimension_numbers=("NCHW", "OIHW", "NCHW"),
            precision=jax.lax.Precision.HIGHEST)

    def bn(x, g, b, m, v):
        g, b = g[None, :, None, None], b[None, :, None, None]
        m, v = m[None, :, None, None], v[None, :, None, None]
        return (x - m) / jnp.sqrt(v + eps) * g + b

    planes = params["conv1_w"].shape[0]
    h = jax.nn.relu(bn(conv(x, params["conv1_w"], stride, 1),
                       params["bn1_gamma"], params["bn1_beta"],
                       params["bn1_mean"], params["bn1_var"]))
    o = bn(conv(h, params["conv2_w"], 1, 1),
           params["bn2_gamma"], params["bn2_beta"],
           params["bn2_mean"], params["bn2_var"])
    if stride != 1 or x.shape[1] != planes:
        sc = bn(conv(x, params["sc_conv_w"], stride, 0),
                params["sc_bn_gamma"], params["sc_bn_beta"],
                params["sc_bn_mean"], params["sc_bn_var"])
    else:
        sc = x
    return jax.nn.relu(o + sc)


def _make_params(key, in_planes, planes, projection):
    ks = jax.random.split(key, 16)

    def conv_init(k, co, ci, kh, kw):
        fan_in = ci * kh * kw
        return jax.random.normal(k, (co, ci, kh, kw), jnp.float32) / math.sqrt(fan_in)

    def bn_init(kg, kb, km, kv, c):
        gamma = 1.0 + 0.1 * jax.random.normal(kg, (c,), jnp.float32)
        beta = 0.1 * jax.random.normal(kb, (c,), jnp.float32)
        mean = 0.1 * jax.random.normal(km, (c,), jnp.float32)
        var = jax.random.uniform(kv, (c,), jnp.float32, minval=0.5, maxval=1.5)
        return gamma, beta, mean, var

    p = {}
    p["conv1_w"] = conv_init(ks[0], planes, in_planes, 3, 3)
    (p["bn1_gamma"], p["bn1_beta"], p["bn1_mean"], p["bn1_var"]) = bn_init(
        ks[1], ks[2], ks[3], ks[4], planes)
    p["conv2_w"] = conv_init(ks[5], planes, planes, 3, 3)
    (p["bn2_gamma"], p["bn2_beta"], p["bn2_mean"], p["bn2_var"]) = bn_init(
        ks[6], ks[7], ks[8], ks[9], planes)
    if projection:
        p["sc_conv_w"] = conv_init(ks[10], planes, in_planes, 1, 1)
        (p["sc_bn_gamma"], p["sc_bn_beta"], p["sc_bn_mean"], p["sc_bn_var"]) = bn_init(
            ks[11], ks[12], ks[13], ks[14], planes)
    return p


if __name__ == "__main__":
    key = jax.random.PRNGKey(0)
    k1, k2, k3, k4 = jax.random.split(key, 4)

    # Case 1: stride=2, in_planes != planes -> projection (1x1 conv + BN) shortcut,
    # fused into the conv2 kernel epilogue.
    batch, in_planes, planes, H, W, stride = 2, 8, 16, 16, 16, 2
    x1 = jax.random.normal(k1, (batch, in_planes, H, W), dtype=jnp.float32)
    p1 = _make_params(k2, in_planes, planes, projection=True)
    out1 = jax.block_until_ready(basic_block_forward(x1, p1, stride=stride))
    ref1 = _ref_forward(x1, p1, stride)
    assert out1.shape == (batch, planes, H // stride, W // stride)
    assert jnp.allclose(out1, ref1, atol=3e-3, rtol=3e-3), "mismatch (projection block)"

    # Case 2: stride=1, in_planes == planes -> identity shortcut (f32 residual).
    x2 = jax.random.normal(k3, (batch, planes, H, W), dtype=jnp.float32)
    p2 = _make_params(k4, planes, planes, projection=False)
    out2 = jax.block_until_ready(basic_block_forward(x2, p2, stride=1))
    ref2 = _ref_forward(x2, p2, 1)
    assert out2.shape == (batch, planes, H, W)
    assert jnp.allclose(out2, ref2, atol=3e-3, rtol=3e-3), "mismatch (identity block)"

    print("KERNEL_OK")
</pallas_src>

<mosaic_0001>
module attributes {stable_mosaic.version = 11 : i64} {
  func.func @kernel(%arg0: i32, %arg1: i32, %arg2: i32, %arg3: memref<64x128xbf16, #tpu.memory_space<vmem>>, %arg4: memref<128x128xbf16, #tpu.memory_space<vmem>>, %arg5: memref<1x128xf32, #tpu.memory_space<vmem>>, %arg6: memref<1x128xf32, #tpu.memory_space<vmem>>, %arg7: memref<64x128xf32, #tpu.memory_space<vmem>>) attributes {dimension_semantics = [#tpu.dimension_semantics<parallel>, #tpu.dimension_semantics<parallel>, #tpu.dimension_semantics<arbitrary>], iteration_bounds = array<i64: 2, 1, 1>, scalar_prefetch = 0 : i64, scratch_operands = 0 : i64, tpu.core_type = #tpu.core_type<tc>, window_params = [{transform_indices = @transform_0, window_bounds = array<i64: 64, 128>}, {transform_indices = @transform_1, window_bounds = array<i64: 128, 128>}, {transform_indices = @transform_2, window_bounds = array<i64: 1, 128>}, {transform_indices = @transform_3, window_bounds = array<i64: 1, 128>}, {transform_indices = @transform_4, window_bounds = array<i64: 64, 128>}]} {
    %c0 = arith.constant 0 : index
    %c0_0 = arith.constant 0 : index
    %0 = vector.load %arg3[%c0, %c0_0] : memref<64x128xbf16, #tpu.memory_space<vmem>>, vector<64x128xbf16>
    %c0_1 = arith.constant 0 : index
    %c0_2 = arith.constant 0 : index
    %1 = vector.load %arg4[%c0_1, %c0_2] : memref<128x128xbf16, #tpu.memory_space<vmem>>, vector<128x128xbf16>
    %cst = arith.constant dense<0.000000e+00> : vector<64x128xf32>
    %2 = tpu.matmul %0, %1, %cst {dimension_numbers = #tpu.dot_dimension_numbers<[1], [0], [0], [1], [0, 0, 1, 1], [], []>} : vector<64x128xbf16>, vector<128x128xbf16>, vector<64x128xf32> -> vector<64x128xf32>
    %c0_3 = arith.constant 0 : index
    %c0_4 = arith.constant 0 : index
    %3 = vector.load %arg5[%c0_3, %c0_4] : memref<1x128xf32, #tpu.memory_space<vmem>>, vector<1x128xf32>
    %4 = vector.broadcast %3 : vector<1x128xf32> to vector<64x128xf32>
    %5 = arith.mulf %2, %4 : vector<64x128xf32>
    %c0_5 = arith.constant 0 : index
    %c0_6 = arith.constant 0 : index
    %6 = vector.load %arg6[%c0_5, %c0_6] : memref<1x128xf32, #tpu.memory_space<vmem>>, vector<1x128xf32>
    %7 = vector.broadcast %6 : vector<1x128xf32> to vector<64x128xf32>
    %8 = arith.addf %5, %7 : vector<64x128xf32>
    %cst_7 = arith.constant 0.000000e+00 : f32
    %9 = vector.broadcast %cst_7 : f32 to vector<64x128xf32>
    %10 = arith.maximumf %8, %9 : vector<64x128xf32>
    %c0_8 = arith.constant 0 : index
    %c0_9 = arith.constant 0 : index
    %11 = vector.load %arg7[%c0_8, %c0_9] : memref<64x128xf32, #tpu.memory_space<vmem>>, vector<64x128xf32>
    tpu.vector_store %arg7[%c0_8, %c0_9], %10 {strides = array<i32>} : memref<64x128xf32, #tpu.memory_space<vmem>>, vector<64x128xf32>,
    return
  }
  func.func @transform_0(%arg0: i32, %arg1: i32, %arg2: i32) -> (i32, i32) {
    %c0_i32 = arith.constant 0 : i32
    return %arg0, %arg2 : i32, i32
  }
  func.func @transform_1(%arg0: i32, %arg1: i32, %arg2: i32) -> (i32, i32) {
    %c0_i32 = arith.constant 0 : i32
    return %arg2, %arg1 : i32, i32
  }
  func.func @transform_2(%arg0: i32, %arg1: i32, %arg2: i32) -> (i32, i32) {
    %c0_i32 = arith.constant 0 : i32
    %c0_i32_0 = arith.constant 0 : i32
    return %c0_i32, %arg1 : i32, i32
  }
  func.func @transform_3(%arg0: i32, %arg1: i32, %arg2: i32) -> (i32, i32) {
    %c0_i32 = arith.constant 0 : i32
    %c0_i32_0 = arith.constant 0 : i32
    return %c0_i32, %arg1 : i32, i32
  }
  func.func @transform_4(%arg0: i32, %arg1: i32, %arg2: i32) -> (i32, i32) {
    %c0_i32 = arith.constant 0 : i32
    return %arg0, %arg1 : i32, i32
  }
}

module attributes {stable_mosaic.version = 11 : i64} {
  func.func @kernel(%arg0: i32, %arg1: i32, %arg2: i32, %arg3: memref<64x256xbf16, #tpu.memory_space<vmem>>, %arg4: memref<256x128xbf16, #tpu.memory_space<vmem>>, %arg5: memref<1x128xf32, #tpu.memory_space<vmem>>, %arg6: memref<1x128xf32, #tpu.memory_space<vmem>>, %arg7: memref<64x128xbf16, #tpu.memory_space<vmem>>, %arg8: memref<128x128xbf16, #tpu.memory_space<vmem>>, %arg9: memref<1x128xf32, #tpu.memory_space<vmem>>, %arg10: memref<1x128xf32, #tpu.memory_space<vmem>>, %arg11: memref<64x128xf32, #tpu.memory_space<vmem>>) attributes {dimension_semantics = [#tpu.dimension_semantics<parallel>, #tpu.dimension_semantics<parallel>, #tpu.dimension_semantics<arbitrary>], iteration_bounds = array<i64: 2, 1, 1>, scalar_prefetch = 0 : i64, scratch_operands = 0 : i64, tpu.core_type = #tpu.core_type<tc>, window_params = [{transform_indices = @transform_0, window_bounds = array<i64: 64, 256>}, {transform_indices = @transform_1, window_bounds = array<i64: 256, 128>}, {transform_indices = @transform_2, window_bounds = array<i64: 1, 128>}, {transform_indices = @transform_3, window_bounds = array<i64: 1, 128>}, {transform_indices = @transform_4, window_bounds = array<i64: 64, 128>}, {transform_indices = @transform_5, window_bounds = array<i64: 128, 128>}, {transform_indices = @transform_6, window_bounds = array<i64: 1, 128>}, {transform_indices = @transform_7, window_bounds = array<i64: 1, 128>}, {transform_indices = @transform_8, window_bounds = array<i64: 64, 128>}]} {
    %c0 = arith.constant 0 : index
    %c0_0 = arith.constant 0 : index
    %0 = vector.load %arg3[%c0, %c0_0] : memref<64x256xbf16, #tpu.memory_space<vmem>>, vector<64x256xbf16>
    %c0_1 = arith.constant 0 : index
    %c0_2 = arith.constant 0 : index
    %1 = vector.load %arg4[%c0_1, %c0_2] : memref<256x128xbf16, #tpu.memory_space<vmem>>, vector<256x128xbf16>
    %cst = arith.constant dense<0.000000e+00> : vector<64x128xf32>
    %2 = tpu.matmul %0, %1, %cst {dimension_numbers = #tpu.dot_dimension_numbers<[1], [0], [0], [1], [0, 0, 1, 1], [], []>} : vector<64x256xbf16>, vector<256x128xbf16>, vector<64x128xf32> -> vector<64x128xf32>
    %c0_3 = arith.constant 0 : index
    %c0_4 = arith.constant 0 : index
    %3 = vector.load %arg5[%c0_3, %c0_4] : memref<1x128xf32, #tpu.memory_space<vmem>>, vector<1x128xf32>
    %4 = vector.broadcast %3 : vector<1x128xf32> to vector<64x128xf32>
    %5 = arith.mulf %2, %4 : vector<64x128xf32>
    %c0_5 = arith.constant 0 : index
    %c0_6 = arith.constant 0 : index
    %6 = vector.load %arg6[%c0_5, %c0_6] : memref<1x128xf32, #tpu.memory_space<vmem>>, vector<1x128xf32>
    %7 = vector.broadcast %6 : vector<1x128xf32> to vector<64x128xf32>
    %8 = arith.addf %5, %7 : vector<64x128xf32>
    %c0_7 = arith.constant 0 : index
    %c0_8 = arith.constant 0 : index
    %9 = vector.load %arg7[%c0_7, %c0_8] : memref<64x128xbf16, #tpu.memory_space<vmem>>, vector<64x128xbf16>
    %c0_9 = arith.constant 0 : index
    %c0_10 = arith.constant 0 : index
    %10 = vector.load %arg8[%c0_9, %c0_10] : memref<128x128xbf16, #tpu.memory_space<vmem>>, vector<128x128xbf16>
    %cst_11 = arith.constant dense<0.000000e+00> : vector<64x128xf32>
    %11 = tpu.matmul %9, %10, %cst_11 {dimension_numbers = #tpu.dot_dimension_numbers<[1], [0], [0], [1], [0, 0, 1, 1], [], []>} : vector<64x128xbf16>, vector<128x128xbf16>, vector<64x128xf32> -> vector<64x128xf32>
    %c0_12 = arith.constant 0 : index
    %c0_13 = arith.constant 0 : index
    %12 = vector.load %arg9[%c0_12, %c0_13] : memref<1x128xf32, #tpu.memory_space<vmem>>, vector<1x128xf32>
    %13 = vector.broadcast %12 : vector<1x128xf32> to vector<64x128xf32>
    %14 = arith.mulf %11, %13 : vector<64x128xf32>
    %c0_14 = arith.constant 0 : index
    %c0_15 = arith.constant 0 : index
    %15 = vector.load %arg10[%c0_14, %c0_15] : memref<1x128xf32, #tpu.memory_space<vmem>>, vector<1x128xf32>
    %16 = vector.broadcast %15 : vector<1x128xf32> to vector<64x128xf32>
    %17 = arith.addf %14, %16 : vector<64x128xf32>
    %18 = arith.addf %8, %17 : vector<64x128xf32>
    %cst_16 = arith.constant 0.000000e+00 : f32
    %19 = vector.broadcast %cst_16 : f32 to vector<64x128xf32>
    %20 = arith.maximumf %18, %19 : vector<64x128xf32>
    %c0_17 = arith.constant 0 : index
    %c0_18 = arith.constant 0 : index
    %21 = vector.load %arg11[%c0_17, %c0_18] : memref<64x128xf32, #tpu.memory_space<vmem>>, vector<64x128xf32>
    tpu.vector_store %arg11[%c0_17, %c0_18], %20 {strides = array<i32>} : memref<64x128xf32, #tpu.memory_space<vmem>>, vector<64x128xf32>,
    return
  }
  func.func @transform_0(%arg0: i32, %arg1: i32, %arg2: i32) -> (i32, i32) {
    %c0_i32 = arith.constant 0 : i32
    return %arg0, %arg2 : i32, i32
  }
  func.func @transform_1(%arg0: i32, %arg1: i32, %arg2: i32) -> (i32, i32) {
    %c0_i32 = arith.constant 0 : i32
    return %arg2, %arg1 : i32, i32
  }
  func.func @transform_2(%arg0: i32, %arg1: i32, %arg2: i32) -> (i32, i32) {
    %c0_i32 = arith.constant 0 : i32
    %c0_i32_0 = arith.constant 0 : i32
    return %c0_i32, %arg1 : i32, i32
  }
  func.func @transform_3(%arg0: i32, %arg1: i32, %arg2: i32) -> (i32, i32) {
    %c0_i32 = arith.constant 0 : i32
    %c0_i32_0 = arith.constant 0 : i32
    return %c0_i32, %arg1 : i32, i32
  }
  func.func @transform_4(%arg0: i32, %arg1: i32, %arg2: i32) -> (i32, i32) {
    %c0_i32 = arith.constant 0 : i32
    %c0_i32_0 = arith.constant 0 : i32
    return %arg0, %c0_i32 : i32, i32
  }
  func.func @transform_5(%arg0: i32, %arg1: i32, %arg2: i32) -> (i32, i32) {
    %c0_i32 = arith.constant 0 : i32
    %c0_i32_0 = arith.constant 0 : i32
    return %c0_i32, %arg1 : i32, i32
  }
  func.func @transform_6(%arg0: i32, %arg1: i32, %arg2: i32) -> (i32, i32) {
    %c0_i32 = arith.constant 0 : i32
    %c0_i32_0 = arith.constant 0 : i32
    return %c0_i32, %arg1 : i32, i32
  }
  func.func @transform_7(%arg0: i32, %arg1: i32, %arg2: i32) -> (i32, i32) {
    %c0_i32 = arith.constant 0 : i32
    %c0_i32_0 = arith.constant 0 : i32
    return %c0_i32, %arg1 : i32, i32
  }
  func.func @transform_8(%arg0: i32, %arg1: i32, %arg2: i32) -> (i32, i32) {
    %c0_i32 = arith.constant 0 : i32
    return %arg0, %arg1 : i32, i32
  }
}

</mosaic_0001>

<llo_original>
// kernel: basic_block_forward.2
$region0: #{basic_block_forward.2}
  #allocation0 [shape = 'u32[]', space=smem, size = 0x4, offset = 0x4, fixed_abs, tag = 'smem constant byte address 0x4 - core index']
  #allocation1 [shape = 'u32[72,128]{1,0:T(1,128)}', space=vmem, size = 0x9000, scoped, tag = 'internal scratch']
  %s0 = inlined_call_operand.vmem [shape: bf16[128,128], index: 0, kind: input, shape index: {}]
  %s1 = inlined_call_operand.vmem [shape: bf16[128,128], index: 1, kind: input, shape index: {}]
  %s2 = inlined_call_operand.vmem [shape: f32[1,128], index: 2, kind: input, shape index: {}]
  %s3 = inlined_call_operand.vmem [shape: f32[1,128], index: 3, kind: input, shape index: {}]
  %s4 = inlined_call_operand.vmem [shape: f32[128,128], index: 4, kind: output, shape index: {}]
  %s5 = sld [smem:[#allocation0]]
  $region49: #{basic_block_forward.2} parent=0
    _
  %s7 = ssub.s32 1, %s5
  %s8 = scalar_select 0, %s7, %s5
  loop: start=0, step=1, limit=4
  $region2: #{basic_block_forward.2} parent=0 // loop_pre_header
    _
  $region3: #{basic_block_forward.2} parent=0 // loop_header
    %s10 = sphi 0, %s14
    %p11 = scmp.ge.s32.totalorder %s10, 4
    %s17 = sphi 0, %s36
    %s18 = sphi 0, %s32
    %s19 = sphi 0, %s28
    %s20 = sphi 0, %s17
    %s21 = sphi 0, %s18
    %s22 = sphi 0, %s19
    %s23 = sphi 0, %s20
    %s24 = sphi 0, %s21
    %s25 = sphi 0, %s22
    %s41 = sphi 0, %s43
    %s44 = sphi 0, %s41
    %s45 = sphi 0, %s44
    %s61 = sphi 0, %s45
    %s69 = sphi 0, %s71
    %s72 = sphi 0, %s69
    %s73 = sphi 0, %s72
    %s89 = sphi 0, %s73
    %s95 = sphi 0, %s97
    %s98 = sphi 0, %s95
    %s99 = sphi 0, %s98
    %s115 = sphi 0, %s99
    %s121 = sphi 0, %s123
    %s124 = sphi 0, %s121
    %s125 = sphi 0, %s124
    %s141 = sphi 0, %s125
    %s149 = sphi 0, %s151
    %s152 = sphi 0, %s149
    %s153 = sphi 0, %s152
    %s169 = sphi 0, %s153
  $region4: #{basic_block_forward.2} parent=0 // loop_header_branch
    %13 = sbr.rel (%p11) target = $region8
  $region5: #{basic_block_forward.2} parent=0 // loop_body
    %s15 = ssub.s32 %s10, 1
    %s16 = ssub.s32 %s10, 2
    %s26 = sadd.s32 1, %s19
    %p27 = scmp.ge.s32.totalorder %s26, 1
    %s28 = scalar_select %p27, 0, %s26
    %s29 = sadd.s32 1, %s18
    %s30 = scalar_select %p27, %s29, %s18
    %p31 = scmp.ge.s32.totalorder %s30, 1
    %s32 = scalar_select %p31, 0, %s30
    %s33 = sadd.s32 1, %s17
    %s34 = scalar_select %p31, %s33, %s17
    %p35 = scmp.ge.s32.totalorder %s34, 2
    %s36 = scalar_select %p35, 0, %s34
    %s37 = ssub.s32 %s17, %s36
    %s38 = ssub.s32 %s19, %s28
    %s39 = sor.u32 %s37, %s38
    %p40 = scmp.eq.s32.totalorder %s39, 0
    %s42 = sadd.s32 %s41, 1
    %s43 = scalar_select %p40, %s41, %s42
    %p46 = pneg %p40
    %p47 = scmp.eq.s32.totalorder %s10, 1
    %p48 = por %p46, %p47
    %p49 = scmp.ne.s32.totalorder %s41, %s44
    %p50 = scmp.eq.s32.totalorder %s10, 0
    %p51 = por %p49, %p50
    %p52 = scmp.ne.s32.totalorder %s41, %s44
    %p53 = scmp.eq.s32.totalorder %s15, 1
    %p54 = por %p52, %p53
    %p55 = scmp.ne.s32.totalorder %s44, %s45
    %p56 = scmp.eq.s32.totalorder %s15, 0
    %p57 = por %p55, %p56
    %p58 = scmp.ne.s32.totalorder %s44, %s45
    %p59 = scmp.eq.s32.totalorder %s16, 1
    %p60 = por %p58, %p59
    %p62 = scmp.ne.s32.totalorder %s45, %s61
    %p63 = scmp.eq.s32.totalorder %s16, 0
    %p64 = por %p62, %p63
    %s65 = ssub.s32 %s19, %s28
    %s66 = ssub.s32 %s18, %s32
    %s67 = sor.u32 %s65, %s66
    %p68 = scmp.eq.s32.totalorder %s67, 0
    %s70 = sadd.s32 %s69, 1
    %s71 = scalar_select %p68, %s69, %s70
    %p74 = pneg %p68
    %p75 = scmp.eq.s32.totalorder %s10, 1
    %p76 = por %p74, %p75
    %p77 = scmp.ne.s32.totalorder %s69, %s72
    %p78 = scmp.eq.s32.totalorder %s10, 0
    %p79 = por %p77, %p78
    %p80 = scmp.ne.s32.totalorder %s69, %s72
    %p81 = scmp.eq.s32.totalorder %s15, 1
    %p82 = por %p80, %p81
    %p83 = scmp.ne.s32.totalorder %s72, %s73
    %p84 = scmp.eq.s32.totalorder %s15, 0
    %p85 = por %p83, %p84
    %p86 = scmp.ne.s32.totalorder %s72, %s73
    %p87 = scmp.eq.s32.totalorder %s16, 1
    %p88 = por %p86, %p87
    %p90 = scmp.ne.s32.totalorder %s73, %s89
    %p91 = scmp.eq.s32.totalorder %s16, 0
    %p92 = por %p90, %p91
    %s93 = ssub.s32 %s18, %s32
    %p94 = scmp.eq.s32.totalorder %s93, 0
    %s96 = sadd.s32 %s95, 1
    %s97 = scalar_select %p94, %s95, %s96
    %p100 = pneg %p94
    %p101 = scmp.eq.s32.totalorder %s10, 1
    %p102 = por %p100, %p101
    %p103 = scmp.ne.s32.totalorder %s95, %s98
    %p104 = scmp.eq.s32.totalorder %s10, 0
    %p105 = por %p103, %p104
    %p106 = scmp.ne.s32.totalorder %s95, %s98
    %p107 = scmp.eq.s32.totalorder %s15, 1
    %p108 = por %p106, %p107
    %p109 = scmp.ne.s32.totalorder %s98, %s99
    %p110 = scmp.eq.s32.totalorder %s15, 0
    %p111 = por %p109, %p110
    %p112 = scmp.ne.s32.totalorder %s98, %s99
    %p113 = scmp.eq.s32.totalorder %s16, 1
    %p114 = por %p112, %p113
    %p116 = scmp.ne.s32.totalorder %s99, %s115
    %p117 = scmp.eq.s32.totalorder %s16, 0
    %p118 = por %p116, %p117
    %s119 = ssub.s32 %s18, %s32
    %p120 = scmp.eq.s32.totalorder %s119, 0
    %s122 = sadd.s32 %s121, 1
    %s123 = scalar_select %p120, %s121, %s122
    %p126 = pneg %p120
    %p127 = scmp.eq.s32.totalorder %s10, 1
    %p128 = por %p126, %p127
    %p129 = scmp.ne.s32.totalorder %s121, %s124
    %p130 = scmp.eq.s32.totalorder %s10, 0
    %p131 = por %p129, %p130
    %p132 = scmp.ne.s32.totalorder %s121, %s124
    %p133 = scmp.eq.s32.totalorder %s15, 1
    %p134 = por %p132, %p133
    %p135 = scmp.ne.s32.totalorder %s124, %s125
    %p136 = scmp.eq.s32.totalorder %s15, 0
    %p137 = por %p135, %p136
    %p138 = scmp.ne.s32.totalorder %s124, %s125
    %p139 = scmp.eq.s32.totalorder %s16, 1
    %p140 = por %p138, %p139
    %p142 = scmp.ne.s32.totalorder %s125, %s141
    %p143 = scmp.eq.s32.totalorder %s16, 0
    %p144 = por %p142, %p143
    %s145 = ssub.s32 %s17, %s36
    %s146 = ssub.s32 %s18, %s32
    %s147 = sor.u32 %s145, %s146
    %p148 = scmp.eq.s32.totalorder %s147, 0
    %s150 = sadd.s32 %s149, 1
    %s151 = scalar_select %p148, %s149, %s150
    %p154 = pneg %p148
    %p155 = scmp.eq.s32.totalorder %s10, 1
    %p156 = por %p154, %p155
    %p157 = scmp.ne.s32.totalorder %s149, %s152
    %p158 = scmp.eq.s32.totalorder %s10, 0
    %p159 = por %p157, %p158
    %p160 = scmp.ne.s32.totalorder %s149, %s152
    %p161 = scmp.eq.s32.totalorder %s15, 1
    %p162 = por %p160, %p161
    %p163 = scmp.ne.s32.totalorder %s152, %s153
    %p164 = scmp.eq.s32.totalorder %s15, 0
    %p165 = por %p163, %p164
    %p166 = scmp.ne.s32.totalorder %s152, %s153
    %p167 = scmp.eq.s32.totalorder %s16, 1
    %p168 = por %p166, %p167
    %p170 = scmp.ne.s32.totalorder %s153, %s169
    %p171 = scmp.eq.s32.totalorder %s16, 0
    %p172 = por %p170, %p171
    %p173 = scmp.le.s32.totalorder 1, %s10
    %p174 = scmp.lt.s32.totalorder %s10, 3
    %p175 = pnand %p173, %p174
    %p176 = pneg %p175
    // Predicated region
    $region9: #{basic_block_forward.2} parent=5 // pred_check
      _
    $region10: #{basic_block_forward.2} parent=5 // pred_check_branch
      %178 = sbr.rel (%p175) target = $region12
    $region11: #{basic_block_forward.2} parent=5 // pred_region
      %s179 = ssub.s32 %s10, 1
      // Predicated region
      $region13: #{basic_block_forward.2} parent=11 // pred_check
        %p180 = pneg %p85
      $region14: #{basic_block_forward.2} parent=11 // pred_check_branch
        %182 = sbr.rel (%p180) target = $region16
      $region15: #{basic_block_forward.2} parent=11 // pred_region
        %s183 = smul.u32 16, %s22
        %p184 = scmp.lt.s32.totalorder %s183, 15
        %s185 = scalar_select %p184, %s183, 15
        %p186 = scmp.lt.s32.totalorder %s21, 0
        %s187 = scalar_select %p186, %s21, 0
        %s188 = sadd.s32 %s187, %s185
        %s189 = smul.addr %s188, 4
        %s190 = scalar_lea.vmem %s1, %s189
        %s191 = smul.u32 16, %s22
      $region16: #{basic_block_forward.2} parent=11 // pred_fallthru
        _
      // Predicated region
      $region17: #{basic_block_forward.2} parent=11 // pred_check
        %p192 = pneg %p111
      $region18: #{basic_block_forward.2} parent=11 // pred_check_branch
        %194 = sbr.rel (%p192) target = $region20
      $region19: #{basic_block_forward.2} parent=11 // pred_region
        %p195 = scmp.lt.s32.totalorder %s21, 0
        %s196 = scalar_select %p195, %s21, 0
        %s197 = scalar_lea.vmem %s2, %s196
      $region20: #{basic_block_forward.2} parent=11 // pred_fallthru
        _
      // Predicated region
      $region21: #{basic_block_forward.2} parent=11 // pred_check
        %p198 = pneg %p137
      $region22: #{basic_block_forward.2} parent=11 // pred_check_branch
        %200 = sbr.rel (%p198) target = $region24
      $region23: #{basic_block_forward.2} parent=11 // pred_region
        %p201 = scmp.lt.s32.totalorder %s21, 0
        %s202 = scalar_select %p201, %s21, 0
        %s203 = scalar_lea.vmem %s3, %s202
      $region24: #{basic_block_forward.2} parent=11 // pred_fallthru
        _
    $region12: #{basic_block_forward.2} parent=5 // pred_fallthru
      _
    %p204 = scmp.lt.s32.totalorder %s10, 2
    // Predicated region
    $region25: #{basic_block_forward.2} parent=5 // pred_check
      %p205 = pneg %p204
    $region26: #{basic_block_forward.2} parent=5 // pred_check_branch
      %207 = sbr.rel (%p205) target = $region28
    $region27: #{basic_block_forward.2} parent=5 // pred_region
      // Predicated region
      $region29: #{basic_block_forward.2} parent=27 // pred_check
        %p208 = pneg %p51
      $region30: #{basic_block_forward.2} parent=27 // pred_check_branch
        %210 = sbr.rel (%p208) target = $region32
      $region31: #{basic_block_forward.2} parent=27 // pred_region
        %s211 = smul.u32 8, %s17
        %p212 = scmp.lt.s32.totalorder %s211, 15
        %s213 = scalar_select %p212, %s211, 15
        %p214 = scmp.lt.s32.totalorder %s19, 0
        %s215 = scalar_select %p214, %s19, 0
        %s216 = sadd.s32 %s215, %s213
        %s217 = smul.addr %s216, 4
        %s218 = scalar_lea.vmem %s0, %s217
        %s219 = smul.u32 8, %s17
      $region32: #{basic_block_forward.2} parent=27 // pred_fallthru
        _
    $region28: #{basic_block_forward.2} parent=5 // pred_fallthru
      _
    %p220 = scmp.le.s32.totalorder 1, %s10
    %p221 = scmp.lt.s32.totalorder %s10, 3
    %p222 = pnand %p220, %p221
    %p223 = pneg %p222
    // Predicated region
    $region33: #{basic_block_forward.2} parent=5 // pred_check
      _
    $region34: #{basic_block_forward.2} parent=5 // pred_check_branch
      %225 = sbr.rel (%p222) target = $region36
    $region35: #{basic_block_forward.2} parent=5 // pred_region
      %s226 = ssub.s32 %s10, 1
      %s227 = smul.u32 8, %s20
      %p228 = scmp.lt.s32.totalorder %s227, 15
      %s229 = scalar_select %p228, %s227, 15
      %p230 = scmp.lt.s32.totalorder %s22, 0
      %s231 = scalar_select %p230, %s22, 0
      %s232 = sadd.s32 %s231, %s229
      %s233 = smul.addr %s232, 4
      %s234 = scalar_lea.vmem %s0, %s233
      %p235 = pneg %p57
      %p236 = pneg %p54
      %s237 = smul.u32 16, %s22
      %p238 = scmp.lt.s32.totalorder %s237, 15
      %s239 = scalar_select %p238, %s237, 15
      %p240 = scmp.lt.s32.totalorder %s21, 0
      %s241 = scalar_select %p240, %s21, 0
      %s242 = sadd.s32 %s241, %s239
      %s243 = smul.addr %s242, 4
      %s244 = scalar_lea.vmem %s1, %s243
      %p245 = pneg %p85
      %p246 = pneg %p82
      %p247 = scmp.lt.s32.totalorder %s21, 0
      %s248 = scalar_select %p247, %s21, 0
      %s249 = scalar_lea.vmem %s2, %s248
      %p250 = pneg %p111
      %p251 = pneg %p108
      %p252 = scmp.lt.s32.totalorder %s21, 0
      %s253 = scalar_select %p252, %s21, 0
      %s254 = scalar_lea.vmem %s3, %s253
      %p255 = pneg %p137
      %p256 = pneg %p134
      %p257 = pneg %p165
      %p258 = pneg %p162
      %s259 = smul.u32 8, %s20
      %p260 = scmp.lt.s32.totalorder %s259, 15
      %s261 = scalar_select %p260, %s259, 15
      %p262 = scmp.lt.s32.totalorder %s21, 0
      %s263 = scalar_select %p262, %s21, 0
      %s264 = sadd.s32 %s263, %s261
      %s265 = smul.addr %s264, 8
      %s266 = scalar_lea.vmem %s4, %s265
      %s267 = smul.u32 8, %s20
      %p268 = scmp.lt.s32.totalorder %s267, 15
      %s269 = scalar_select %p268, %s267, 15
      %p270 = scmp.lt.s32.totalorder %s22, 0
      %s271 = scalar_select %p270, %s22, 0
      %s272 = sadd.s32 %s271, %s269
      %s273 = smul.addr %s272, 4
      %s274 = scalar_lea.vmem %s0, %s273
      %s275 = smul.u32 8, %s20
      %s276 = smul.u32 16, %s22
      %p277 = scmp.lt.s32.totalorder %s276, 15
      %s278 = scalar_select %p277, %s276, 15
      %p279 = scmp.lt.s32.totalorder %s21, 0
      %s280 = scalar_select %p279, %s21, 0
      %s281 = sadd.s32 %s280, %s278
      %s282 = smul.addr %s281, 4
      %s283 = scalar_lea.vmem %s1, %s282
      %s284 = smul.u32 16, %s22
      %p285 = scmp.lt.s32.totalorder %s21, 0
      %s286 = scalar_select %p285, %s21, 0
      %s287 = scalar_lea.vmem %s2, %s286
      %p288 = scmp.lt.s32.totalorder %s21, 0
      %s289 = scalar_select %p288, %s21, 0
      %s290 = scalar_lea.vmem %s3, %s289
      %s291 = smul.u32 8, %s20
      %p292 = scmp.lt.s32.totalorder %s291, 15
      %s293 = scalar_select %p292, %s291, 15
      %p294 = scmp.lt.s32.totalorder %s21, 0
      %s295 = scalar_select %p294, %s21, 0
      %s296 = sadd.s32 %s295, %s293
      %s297 = smul.addr %s296, 8
      %s298 = scalar_lea.vmem %s4, %s297
      %s299 = smul.u32 8, %s20
      %v300 = vld [vmem:[%s274] sm:$0xf]
      %v301 = vld [vmem:[%s274 + $0x4] sm:$0xf]
      %v302 = vld [vmem:[%s274 + $0x8] sm:$0xf]
      %v303 = vld [vmem:[%s274 + $0xc] sm:$0xf]
      %v304 = vld [vmem:[%s274 + $0x10] sm:$0xf]
      %v305 = vld [vmem:[%s274 + $0x14] sm:$0xf]
      %v306 = vld [vmem:[%s274 + $0x18] sm:$0xf]
      %v307 = vld [vmem:[%s274 + $0x1c] sm:$0xf]
      %v308 = vld [vmem:[%s283] sm:$0xf]
      %v309 = vld [vmem:[%s283 + $0x4] sm:$0xf]
      %v310 = vld [vmem:[%s283 + $0x8] sm:$0xf]
      %v311 = vld [vmem:[%s283 + $0xc] sm:$0xf]
      %v312 = vld [vmem:[%s283 + $0x10] sm:$0xf]
      %v313 = vld [vmem:[%s283 + $0x14] sm:$0xf]
      %v314 = vld [vmem:[%s283 + $0x18] sm:$0xf]
      %v315 = vld [vmem:[%s283 + $0x1c] sm:$0xf]
      %v316 = vld [vmem:[%s283 + $0x20] sm:$0xf]
      %v317 = vld [vmem:[%s283 + $0x24] sm:$0xf]
      %v318 = vld [vmem:[%s283 + $0x28] sm:$0xf]
      %v319 = vld [vmem:[%s283 + $0x2c] sm:$0xf]
      %v320 = vld [vmem:[%s283 + $0x30] sm:$0xf]
      %v321 = vld [vmem:[%s283 + $0x34] sm:$0xf]
      %v322 = vld [vmem:[%s283 + $0x38] sm:$0xf]
      %v323 = vld [vmem:[%s283 + $0x3c] sm:$0xf]
      %v332 = vunpack.c.l.b16 %v300
      %v333 = vunpack.c.l.b16 %v301
      %v334 = vunpack.c.l.b16 %v302
      %v335 = vunpack.c.l.b16 %v303
      %v336 = vunpack.c.l.b16 %v304
      %v337 = vunpack.c.l.b16 %v305
      %v338 = vunpack.c.l.b16 %v306
      %v339 = vunpack.c.l.b16 %v307
      %v340 = vpack.c.b16 %v333, %v332
      %v341 = vpack.c.b16 %v335, %v334
      %v342 = vpack.c.b16 %v337, %v336
      %v343 = vpack.c.b16 %v339, %v338
      %v364 = vunpack.c.l.b16 %v308
      %v365 = vunpack.c.l.b16 %v309
      %v366 = vunpack.c.l.b16 %v310
      %v367 = vunpack.c.l.b16 %v311
      %v368 = vunpack.c.l.b16 %v312
      %v369 = vunpack.c.l.b16 %v313
      %v370 = vunpack.c.l.b16 %v314
      %v371 = vunpack.c.l.b16 %v315
      %v372 = vunpack.c.l.b16 %v316
      %v373 = vunpack.c.l.b16 %v317
      %v374 = vunpack.c.l.b16 %v318
      %v375 = vunpack.c.l.b16 %v319
      %v376 = vunpack.c.l.b16 %v320
      %v377 = vunpack.c.l.b16 %v321
      %v378 = vunpack.c.l.b16 %v322
      %v379 = vunpack.c.l.b16 %v323
      %v380 = vpack.c.b16 %v365, %v364
      %v381 = vpack.c.b16 %v367, %v366
      %v382 = vpack.c.b16 %v369, %v368
      %v383 = vpack.c.b16 %v371, %v370
      %v384 = vpack.c.b16 %v373, %v372
      %v385 = vpack.c.b16 %v375, %v374
      %v386 = vpack.c.b16 %v377, %v376
      %v387 = vpack.c.b16 %v379, %v378
      %396 = vmatpush.bf16.msra.mxu0 %v387
      %397 = vmatpush.bf16.msra.mxu0 %v386
      %398 = vmatpush.bf16.msra.mxu0 %v385
      %399 = vmatpush.bf16.msra.mxu0 %v384
      %400 = vmatpush.bf16.msra.mxu0 %v383
      %401 = vmatpush.bf16.msra.mxu0 %v382
      %402 = vmatpush.bf16.msra.mxu0 %v381
      %403 = vmatpush.bf16.msra.mxu0 %v380
      %404 = vmatmul.bf16.gmra.mxu0 %v340
      %v405 = vpop.f32.mrf.mxu0
      %v406 = vadd.f32 0.0, %v405
      %v407 = vpop.f32.mrf.mxu0
      %v408 = vadd.f32 0.0, %v407
      %409 = vmatmul.bf16.gmra.mxu0 %v341
      %v410 = vpop.f32.mrf.mxu0
      %v411 = vadd.f32 0.0, %v410
      %v412 = vpop.f32.mrf.mxu0
      %v413 = vadd.f32 0.0, %v412
      %414 = vmatmul.bf16.gmra.mxu0 %v342
      %v415 = vpop.f32.mrf.mxu0
      %v416 = vadd.f32 0.0, %v415
      %v417 = vpop.f32.mrf.mxu0
      %v418 = vadd.f32 0.0, %v417
      %419 = vmatmul.bf16.gmra.mxu0 %v343
      %v420 = vpop.f32.mrf.mxu0
      %v421 = vadd.f32 0.0, %v420
      %v422 = vpop.f32.mrf.mxu0
      %v423 = vadd.f32 0.0, %v422
      %424 = vdwg.mxu0
      %v425 = vld [vmem:[%s287] sm:$0x1]
      %v427 = vperm.slane %v425, 0
      %v429 = vmul.f32 %v406, %v427
      %v430 = vmul.f32 %v408, %v427
      %v431 = vmul.f32 %v411, %v427
      %v432 = vmul.f32 %v413, %v427
      %v433 = vmul.f32 %v416, %v427
      %v434 = vmul.f32 %v418, %v427
      %v435 = vmul.f32 %v421, %v427
      %v436 = vmul.f32 %v423, %v427
      %v437 = vld [vmem:[%s290] sm:$0x1]
      %v439 = vperm.slane %v437, 0
      %v441 = vadd.f32 %v429, %v439
      %v442 = vadd.f32 %v430, %v439
      %v443 = vadd.f32 %v431, %v439
      %v444 = vadd.f32 %v432, %v439
      %v445 = vadd.f32 %v433, %v439
      %v446 = vadd.f32 %v434, %v439
      %v447 = vadd.f32 %v435, %v439
      %v448 = vadd.f32 %v436, %v439
      %v449 = vmax.f32 %v441, 0.0
      %v450 = vmax.f32 %v442, 0.0
      %v451 = vmax.f32 %v443, 0.0
      %v452 = vmax.f32 %v444, 0.0
      %v453 = vmax.f32 %v445, 0.0
      %v454 = vmax.f32 %v446, 0.0
      %v455 = vmax.f32 %v447, 0.0
      %v456 = vmax.f32 %v448, 0.0
      %457 = vst [vmem:[%s298] sm:$0xff] %v449
      %458 = vst [vmem:[%s298 + $0x8] sm:$0xff] %v450
      %459 = vst [vmem:[%s298 + $0x10] sm:$0xff] %v451
      %460 = vst [vmem:[%s298 + $0x18] sm:$0xff] %v452
      %461 = vst [vmem:[%s298 + $0x20] sm:$0xff] %v453
      %462 = vst [vmem:[%s298 + $0x28] sm:$0xff] %v454
      %463 = vst [vmem:[%s298 + $0x30] sm:$0xff] %v455
      %464 = vst [vmem:[%s298 + $0x38] sm:$0xff] %v456
      %s465 = smul.u32 8, %s20
      %p466 = scmp.lt.s32.totalorder %s465, 15
      %s467 = scalar_select %p466, %s465, 15
      %p468 = scmp.lt.s32.totalorder %s21, 0
      %s469 = scalar_select %p468, %s21, 0
      %s470 = sadd.s32 %s469, %s467
      %s471 = smul.addr %s470, 8
      %s472 = scalar_lea.vmem %s4, %s471
      // Predicated region
      $region37: #{basic_block_forward.2} parent=35 // pred_check
        %p473 = pneg %p162
      $region38: #{basic_block_forward.2} parent=35 // pred_check_branch
        %475 = sbr.rel (%p473) target = $region40
      $region39: #{basic_block_forward.2} parent=35 // pred_region
        %s476 = smul.u32 8, %s20
      $region40: #{basic_block_forward.2} parent=35 // pred_fallthru
        _
    $region36: #{basic_block_forward.2} parent=5 // pred_fallthru
      _
    %p477 = scmp.le.s32.totalorder 2, %s10
    // Predicated region
    $region41: #{basic_block_forward.2} parent=5 // pred_check
      %p478 = pneg %p477
    $region42: #{basic_block_forward.2} parent=5 // pred_check_branch
      %480 = sbr.rel (%p478) target = $region44
    $region43: #{basic_block_forward.2} parent=5 // pred_region
      %s481 = ssub.s32 %s10, 2
      // Predicated region
      $region45: #{basic_block_forward.2} parent=43 // pred_check
        %p482 = pneg %p168
      $region46: #{basic_block_forward.2} parent=43 // pred_check_branch
        %484 = sbr.rel (%p482) target = $region48
      $region47: #{basic_block_forward.2} parent=43 // pred_region
        %s485 = smul.u32 8, %s23
        %p486 = scmp.lt.s32.totalorder %s485, 15
        %s487 = scalar_select %p486, %s485, 15
        %p488 = scmp.lt.s32.totalorder %s24, 0
        %s489 = scalar_select %p488, %s24, 0
        %s490 = sadd.s32 %s489, %s487
        %s491 = smul.addr %s490, 8
        %s492 = scalar_lea.vmem %s4, %s491
      $region48: #{basic_block_forward.2} parent=43 // pred_fallthru
        _
    $region44: #{basic_block_forward.2} parent=5 // pred_fallthru
      _
  $region6: #{basic_block_forward.2} parent=0 // loop_footer
    %s14 = sadd.s32 1, %s10
  $region7: #{basic_block_forward.2} parent=0 // loop_footer_branch
    %9 = sbr.rel target = $region3
  $region8: #{basic_block_forward.2} parent=0 // loop_exit
    _

// kernel: basic_block_forward.3
$region0: #{basic_block_forward.3}
  #allocation0 [shape = 'u32[]', space=smem, size = 0x4, offset = 0x4, fixed_abs, tag = 'smem constant byte address 0x4 - core index']
  #allocation1 [shape = 'u32[72,128]{1,0:T(1,128)}', space=vmem, size = 0x9000, scoped, tag = 'internal scratch']
  %s0 = inlined_call_operand.vmem [shape: bf16[128,256], index: 0, kind: input, shape index: {}]
  %s1 = inlined_call_operand.vmem [shape: bf16[256,128], index: 1, kind: input, shape index: {}]
  %s2 = inlined_call_operand.vmem [shape: f32[1,128], index: 2, kind: input, shape index: {}]
  %s3 = inlined_call_operand.vmem [shape: f32[1,128], index: 3, kind: input, shape index: {}]
  %s4 = inlined_call_operand.vmem [shape: bf16[128,128], index: 4, kind: input, shape index: {}]
  %s5 = inlined_call_operand.vmem [shape: bf16[128,128], index: 5, kind: input, shape index: {}]
  %s6 = inlined_call_operand.vmem [shape: f32[1,128], index: 6, kind: input, shape index: {}]
  %s7 = inlined_call_operand.vmem [shape: f32[1,128], index: 7, kind: input, shape index: {}]
  %s8 = inlined_call_operand.hbm [shape: f32[128,128], index: 8, kind: output, shape index: {}]
  %s9 = sld [smem:[#allocation0]]
  $region65: #{basic_block_forward.3} parent=0
    _
  %s11 = ssub.s32 1, %s9
  %s12 = scalar_select 0, %s11, %s9
  $region1: #{basic_block_forward.3} parent=0
    #allocation2 [shape = 'u8[65536]{0}', space=vmem, size = 0x10000, scoped, tag = 'output window, operand 0']
    #allocation3 [shape = 's32[2]{0}', space=sflag, size = 0x8, scoped, tag = 'scoped memory for basic_block_forward.3']
    %13 = vsyncpa [#allocation3], 0
    %s14 = scalar_lea.sflag [#allocation3], 1
    %15 = vsyncpa %s14, 0
    loop: start=0, step=1, limit=4
    $region2: #{basic_block_forward.3} parent=1 // loop_pre_header
      _
    $region3: #{basic_block_forward.3} parent=1 // loop_header
      %s17 = sphi 0, %s21
      %p18 = scmp.ge.s32.totalorder %s17, 4
      %s24 = sphi 0, %s43
      %s25 = sphi 0, %s39
      %s26 = sphi 0, %s35
      %s27 = sphi 0, %s24
      %s28 = sphi 0, %s25
      %s29 = sphi 0, %s26
      %s30 = sphi 0, %s27
      %s31 = sphi 0, %s28
      %s32 = sphi 0, %s29
      %s48 = sphi 0, %s50
      %s51 = sphi 0, %s48
      %s52 = sphi 0, %s51
      %s68 = sphi 0, %s52
      %s76 = sphi 0, %s78
      %s79 = sphi 0, %s76
      %s80 = sphi 0, %s79
      %s96 = sphi 0, %s80
      %s102 = sphi 0, %s104
      %s105 = sphi 0, %s102
      %s106 = sphi 0, %s105
      %s122 = sphi 0, %s106
      %s128 = sphi 0, %s130
      %s131 = sphi 0, %s128
      %s132 = sphi 0, %s131
      %s148 = sphi 0, %s132
      %s154 = sphi 0, %s156
      %s157 = sphi 0, %s154
      %s158 = sphi 0, %s157
      %s174 = sphi 0, %s158
      %s180 = sphi 0, %s182
      %s183 = sphi 0, %s180
      %s184 = sphi 0, %s183
      %s200 = sphi 0, %s184
      %s206 = sphi 0, %s208
      %s209 = sphi 0, %s206
      %s210 = sphi 0, %s209
      %s226 = sphi 0, %s210
      %s232 = sphi 0, %s234
      %s235 = sphi 0, %s232
      %s236 = sphi 0, %s235
      %s252 = sphi 0, %s236
      %s260 = sphi 0, %s262
      %s263 = sphi 0, %s260
      %s264 = sphi 0, %s263
      %s280 = sphi 0, %s264
    $region4: #{basic_block_forward.3} parent=1 // loop_header_branch
      %20 = sbr.rel (%p18) target = $region8
    $region5: #{basic_block_forward.3} parent=1 // loop_body
      %s22 = ssub.s32 %s17, 1
      %s23 = ssub.s32 %s17, 2
      %s33 = sadd.s32 1, %s26
      %p34 = scmp.ge.s32.totalorder %s33, 1
      %s35 = scalar_select %p34, 0, %s33
      %s36 = sadd.s32 1, %s25
      %s37 = scalar_select %p34, %s36, %s25
      %p38 = scmp.ge.s32.totalorder %s37, 1
      %s39 = scalar_select %p38, 0, %s37
      %s40 = sadd.s32 1, %s24
      %s41 = scalar_select %p38, %s40, %s24
      %p42 = scmp.ge.s32.totalorder %s41, 2
      %s43 = scalar_select %p42, 0, %s41
      %s44 = ssub.s32 %s24, %s43
      %s45 = ssub.s32 %s26, %s35
      %s46 = sor.u32 %s44, %s45
      %p47 = scmp.eq.s32.totalorder %s46, 0
      %s49 = sadd.s32 %s48, 1
      %s50 = scalar_select %p47, %s48, %s49
      %p53 = pneg %p47
      %p54 = scmp.eq.s32.totalorder %s17, 1
      %p55 = por %p53, %p54
      %p56 = scmp.ne.s32.totalorder %s48, %s51
      %p57 = scmp.eq.s32.totalorder %s17, 0
      %p58 = por %p56, %p57
      %p59 = scmp.ne.s32.totalorder %s48, %s51
      %p60 = scmp.eq.s32.totalorder %s22, 1
      %p61 = por %p59, %p60
      %p62 = scmp.ne.s32.totalorder %s51, %s52
      %p63 = scmp.eq.s32.totalorder %s22, 0
      %p64 = por %p62, %p63
      %p65 = scmp.ne.s32.totalorder %s51, %s52
      %p66 = scmp.eq.s32.totalorder %s23, 1
      %p67 = por %p65, %p66
      %p69 = scmp.ne.s32.totalorder %s52, %s68
      %p70 = scmp.eq.s32.totalorder %s23, 0
      %p71 = por %p69, %p70
      %s72 = ssub.s32 %s26, %s35
      %s73 = ssub.s32 %s25, %s39
      %s74 = sor.u32 %s72, %s73
      %p75 = scmp.eq.s32.totalorder %s74, 0
      %s77 = sadd.s32 %s76, 1
      %s78 = scalar_select %p75, %s76, %s77
      %p81 = pneg %p75
      %p82 = scmp.eq.s32.totalorder %s17, 1
      %p83 = por %p81, %p82
      %p84 = scmp.ne.s32.totalorder %s76, %s79
      %p85 = scmp.eq.s32.totalorder %s17, 0
      %p86 = por %p84, %p85
      %p87 = scmp.ne.s32.totalorder %s76, %s79
      %p88 = scmp.eq.s32.totalorder %s22, 1
      %p89 = por %p87, %p88
      %p90 = scmp.ne.s32.totalorder %s79, %s80
      %p91 = scmp.eq.s32.totalorder %s22, 0
      %p92 = por %p90, %p91
      %p93 = scmp.ne.s32.totalorder %s79, %s80
      %p94 = scmp.eq.s32.totalorder %s23, 1
      %p95 = por %p93, %p94
      %p97 = scmp.ne.s32.totalorder %s80, %s96
      %p98 = scmp.eq.s32.totalorder %s23, 0
      %p99 = por %p97, %p98
      %s100 = ssub.s32 %s25, %s39
      %p101 = scmp.eq.s32.totalorder %s100, 0
      %s103 = sadd.s32 %s102, 1
      %s104 = scalar_select %p101, %s102, %s103
      %p107 = pneg %p101
      %p108 = scmp.eq.s32.totalorder %s17, 1
      %p109 = por %p107, %p108
      %p110 = scmp.ne.s32.totalorder %s102, %s105
      %p111 = scmp.eq.s32.totalorder %s17, 0
      %p112 = por %p110, %p111
      %p113 = scmp.ne.s32.totalorder %s102, %s105
      %p114 = scmp.eq.s32.totalorder %s22, 1
      %p115 = por %p113, %p114
      %p116 = scmp.ne.s32.totalorder %s105, %s106
      %p117 = scmp.eq.s32.totalorder %s22, 0
      %p118 = por %p116, %p117
      %p119 = scmp.ne.s32.totalorder %s105, %s106
      %p120 = scmp.eq.s32.totalorder %s23, 1
      %p121 = por %p119, %p120
      %p123 = scmp.ne.s32.totalorder %s106, %s122
      %p124 = scmp.eq.s32.totalorder %s23, 0
      %p125 = por %p123, %p124
      %s126 = ssub.s32 %s25, %s39
      %p127 = scmp.eq.s32.totalorder %s126, 0
      %s129 = sadd.s32 %s128, 1
      %s130 = scalar_select %p127, %s128, %s129
      %p133 = pneg %p127
      %p134 = scmp.eq.s32.totalorder %s17, 1
      %p135 = por %p133, %p134
      %p136 = scmp.ne.s32.totalorder %s128, %s131
      %p137 = scmp.eq.s32.totalorder %s17, 0
      %p138 = por %p136, %p137
      %p139 = scmp.ne.s32.totalorder %s128, %s131
      %p140 = scmp.eq.s32.totalorder %s22, 1
      %p141 = por %p139, %p140
      %p142 = scmp.ne.s32.totalorder %s131, %s132
      %p143 = scmp.eq.s32.totalorder %s22, 0
      %p144 = por %p142, %p143
      %p145 = scmp.ne.s32.totalorder %s131, %s132
      %p146 = scmp.eq.s32.totalorder %s23, 1
      %p147 = por %p145, %p146
      %p149 = scmp.ne.s32.totalorder %s132, %s148
      %p150 = scmp.eq.s32.totalorder %s23, 0
      %p151 = por %p149, %p150
      %s152 = ssub.s32 %s24, %s43
      %p153 = scmp.eq.s32.totalorder %s152, 0
      %s155 = sadd.s32 %s154, 1
      %s156 = scalar_select %p153, %s154, %s155
      %p159 = pneg %p153
      %p160 = scmp.eq.s32.totalorder %s17, 1
      %p161 = por %p159, %p160
      %p162 = scmp.ne.s32.totalorder %s154, %s157
      %p163 = scmp.eq.s32.totalorder %s17, 0
      %p164 = por %p162, %p163
      %p165 = scmp.ne.s32.totalorder %s154, %s157
      %p166 = scmp.eq.s32.totalorder %s22, 1
      %p167 = por %p165, %p166
      %p168 = scmp.ne.s32.totalorder %s157, %s158
      %p169 = scmp.eq.s32.totalorder %s22, 0
      %p170 = por %p168, %p169
      %p171 = scmp.ne.s32.totalorder %s157, %s158
      %p172 = scmp.eq.s32.totalorder %s23, 1
      %p173 = por %p171, %p172
      %p175 = scmp.ne.s32.totalorder %s158, %s174
      %p176 = scmp.eq.s32.totalorder %s23, 0
      %p177 = por %p175, %p176
      %s178 = ssub.s32 %s25, %s39
      %p179 = scmp.eq.s32.totalorder %s178, 0
      %s181 = sadd.s32 %s180, 1
      %s182 = scalar_select %p179, %s180, %s181
      %p185 = pneg %p179
      %p186 = scmp.eq.s32.totalorder %s17, 1
      %p187 = por %p185, %p186
      %p188 = scmp.ne.s32.totalorder %s180, %s183
      %p189 = scmp.eq.s32.totalorder %s17, 0
      %p190 = por %p188, %p189
      %p191 = scmp.ne.s32.totalorder %s180, %s183
      %p192 = scmp.eq.s32.totalorder %s22, 1
      %p193 = por %p191, %p192
      %p194 = scmp.ne.s32.totalorder %s183, %s184
      %p195 = scmp.eq.s32.totalorder %s22, 0
      %p196 = por %p194, %p195
      %p197 = scmp.ne.s32.totalorder %s183, %s184
      %p198 = scmp.eq.s32.totalorder %s23, 1
      %p199 = por %p197, %p198
      %p201 = scmp.ne.s32.totalorder %s184, %s200
      %p202 = scmp.eq.s32.totalorder %s23, 0
      %p203 = por %p201, %p202
      %s204 = ssub.s32 %s25, %s39
      %p205 = scmp.eq.s32.totalorder %s204, 0
      %s207 = sadd.s32 %s206, 1
      %s208 = scalar_select %p205, %s206, %s207
      %p211 = pneg %p205
      %p212 = scmp.eq.s32.totalorder %s17, 1
      %p213 = por %p211, %p212
      %p214 = scmp.ne.s32.totalorder %s206, %s209
      %p215 = scmp.eq.s32.totalorder %s17, 0
      %p216 = por %p214, %p215
      %p217 = scmp.ne.s32.totalorder %s206, %s209
      %p218 = scmp.eq.s32.totalorder %s22, 1
      %p219 = por %p217, %p218
      %p220 = scmp.ne.s32.totalorder %s209, %s210
      %p221 = scmp.eq.s32.totalorder %s22, 0
      %p222 = por %p220, %p221
      %p223 = scmp.ne.s32.totalorder %s209, %s210
      %p224 = scmp.eq.s32.totalorder %s23, 1
      %p225 = por %p223, %p224
      %p227 = scmp.ne.s32.totalorder %s210, %s226
      %p228 = scmp.eq.s32.totalorder %s23, 0
      %p229 = por %p227, %p228
      %s230 = ssub.s32 %s25, %s39
      %p231 = scmp.eq.s32.totalorder %s230, 0
      %s233 = sadd.s32 %s232, 1
      %s234 = scalar_select %p231, %s232, %s233
      %p237 = pneg %p231
      %p238 = scmp.eq.s32.totalorder %s17, 1
      %p239 = por %p237, %p238
      %p240 = scmp.ne.s32.totalorder %s232, %s235
      %p241 = scmp.eq.s32.totalorder %s17, 0
      %p242 = por %p240, %p241
      %p243 = scmp.ne.s32.totalorder %s232, %s235
      %p244 = scmp.eq.s32.totalorder %s22, 1
      %p245 = por %p243, %p244
      %p246 = scmp.ne.s32.totalorder %s235, %s236
      %p247 = scmp.eq.s32.totalorder %s22, 0
      %p248 = por %p246, %p247
      %p249 = scmp.ne.s32.totalorder %s235, %s236
      %p250 = scmp.eq.s32.totalorder %s23, 1
      %p251 = por %p249, %p250
      %p253 = scmp.ne.s32.totalorder %s236, %s252
      %p254 = scmp.eq.s32.totalorder %s23, 0
      %p255 = por %p253, %p254
      %s256 = ssub.s32 %s24, %s43
      %s257 = ssub.s32 %s25, %s39
      %s258 = sor.u32 %s256, %s257
      %p259 = scmp.eq.s32.totalorder %s258, 0
      %s261 = sadd.s32 %s260, 1
      %s262 = scalar_select %p259, %s260, %s261
      %p265 = pneg %p259
      %p266 = scmp.eq.s32.totalorder %s17, 1
      %p267 = por %p265, %p266
      %p268 = scmp.ne.s32.totalorder %s260, %s263
      %p269 = scmp.eq.s32.totalorder %s17, 0
      %p270 = por %p268, %p269
      %p271 = scmp.ne.s32.totalorder %s260, %s263
      %p272 = scmp.eq.s32.totalorder %s22, 1
      %p273 = por %p271, %p272
      %p274 = scmp.ne.s32.totalorder %s263, %s264
      %p275 = scmp.eq.s32.totalorder %s22, 0
      %p276 = por %p274, %p275
      %p277 = scmp.ne.s32.totalorder %s263, %s264
      %p278 = scmp.eq.s32.totalorder %s23, 1
      %p279 = por %p277, %p278
      %p281 = scmp.ne.s32.totalorder %s264, %s280
      %p282 = scmp.eq.s32.totalorder %s23, 0
      %p283 = por %p281, %p282
      %p284 = scmp.le.s32.totalorder 1, %s17
      %p285 = scmp.lt.s32.totalorder %s17, 3
      %p286 = pnand %p284, %p285
      %p287 = pneg %p286
      // Predicated region
      $region9: #{basic_block_forward.3} parent=5 // pred_check
        _
      $region10: #{basic_block_forward.3} parent=5 // pred_check_branch
        %289 = sbr.rel (%p286) target = $region12
      $region11: #{basic_block_forward.3} parent=5 // pred_region
        %s290 = ssub.s32 %s17, 1
        // Predicated region
        $region13: #{basic_block_forward.3} parent=11 // pred_check
          %p291 = pneg %p92
        $region14: #{basic_block_forward.3} parent=11 // pred_check_branch
          %293 = sbr.rel (%p291) target = $region16
        $region15: #{basic_block_forward.3} parent=11 // pred_region
          %s294 = smul.u32 32, %s29
          %p295 = scmp.lt.s32.totalorder %s294, 31
          %s296 = scalar_select %p295, %s294, 31
          %p297 = scmp.lt.s32.totalorder %s28, 0
          %s298 = scalar_select %p297, %s28, 0
          %s299 = sadd.s32 %s298, %s296
          %s300 = smul.addr %s299, 4
          %s301 = scalar_lea.vmem %s1, %s300
          %s302 = smul.u32 32, %s29
        $region16: #{basic_block_forward.3} parent=11 // pred_fallthru
          _
        // Predicated region
        $region17: #{basic_block_forward.3} parent=11 // pred_check
          %p303 = pneg %p118
        $region18: #{basic_block_forward.3} parent=11 // pred_check_branch
          %305 = sbr.rel (%p303) target = $region20
        $region19: #{basic_block_forward.3} parent=11 // pred_region
          %p306 = scmp.lt.s32.totalorder %s28, 0
          %s307 = scalar_select %p306, %s28, 0
          %s308 = scalar_lea.vmem %s2, %s307
        $region20: #{basic_block_forward.3} parent=11 // pred_fallthru
          _
        // Predicated region
        $region21: #{basic_block_forward.3} parent=11 // pred_check
          %p309 = pneg %p144
        $region22: #{basic_block_forward.3} parent=11 // pred_check_branch
          %311 = sbr.rel (%p309) target = $region24
        $region23: #{basic_block_forward.3} parent=11 // pred_region
          %p312 = scmp.lt.s32.totalorder %s28, 0
          %s313 = scalar_select %p312, %s28, 0
          %s314 = scalar_lea.vmem %s3, %s313
        $region24: #{basic_block_forward.3} parent=11 // pred_fallthru
          _
        // Predicated region
        $region25: #{basic_block_forward.3} parent=11 // pred_check
          %p315 = pneg %p196
        $region26: #{basic_block_forward.3} parent=11 // pred_check_branch
          %317 = sbr.rel (%p315) target = $region28
        $region27: #{basic_block_forward.3} parent=11 // pred_region
          %p318 = scmp.lt.s32.totalorder %s28, 0
          %s319 = scalar_select %p318, %s28, 0
          %s320 = smul.addr %s319, 4
          %s321 = scalar_lea.vmem %s5, %s320
        $region28: #{basic_block_forward.3} parent=11 // pred_fallthru
          _
        // Predicated region
        $region29: #{basic_block_forward.3} parent=11 // pred_check
          %p322 = pneg %p222
        $region30: #{basic_block_forward.3} parent=11 // pred_check_branch
          %324 = sbr.rel (%p322) target = $region32
        $region31: #{basic_block_forward.3} parent=11 // pred_region
          %p325 = scmp.lt.s32.totalorder %s28, 0
          %s326 = scalar_select %p325, %s28, 0
          %s327 = scalar_lea.vmem %s6, %s326
        $region32: #{basic_block_forward.3} parent=11 // pred_fallthru
          _
        // Predicated region
        $region33: #{basic_block_forward.3} parent=11 // pred_check
          %p328 = pneg %p248
        $region34: #{basic_block_forward.3} parent=11 // pred_check_branch
          %330 = sbr.rel (%p328) target = $region36
        $region35: #{basic_block_forward.3} parent=11 // pred_region
          %p331 = scmp.lt.s32.totalorder %s28, 0
          %s332 = scalar_select %p331, %s28, 0
          %s333 = scalar_lea.vmem %s7, %s332
        $region36: #{basic_block_forward.3} parent=11 // pred_fallthru
          _
      $region12: #{basic_block_forward.3} parent=5 // pred_fallthru
        _
      %p334 = scmp.lt.s32.totalorder %s17, 2
      // Predicated region
      $region37: #{basic_block_forward.3} parent=5 // pred_check
        %p335 = pneg %p334
      $region38: #{basic_block_forward.3} parent=5 // pred_check_branch
        %337 = sbr.rel (%p335) target = $region40
      $region39: #{basic_block_forward.3} parent=5 // pred_region
        // Predicated region
        $region41: #{basic_block_forward.3} parent=39 // pred_check
          %p338 = pneg %p58
        $region42: #{basic_block_forward.3} parent=39 // pred_check_branch
          %340 = sbr.rel (%p338) target = $region44
        $region43: #{basic_block_forward.3} parent=39 // pred_region
          %s341 = smul.u32 8, %s24
          %s342 = smul.u32 2, %s26
          %p343 = scmp.lt.s32.totalorder %s341, 15
          %s344 = scalar_select %p343, %s341, 15
          %p345 = scmp.lt.s32.totalorder %s342, 1
          %s346 = scalar_select %p345, %s342, 1
          %s347 = smul.addr %s344, 2
          %s348 = sadd.s32 %s346, %s347
          %s349 = smul.addr %s348, 4
          %s350 = scalar_lea.vmem %s0, %s349
          %s351 = smul.u32 8, %s24
          %s352 = smul.u32 2, %s26
        $region44: #{basic_block_forward.3} parent=39 // pred_fallthru
          _
        // Predicated region
        $region45: #{basic_block_forward.3} parent=39 // pred_check
          %p353 = pneg %p164
        $region46: #{basic_block_forward.3} parent=39 // pred_check_branch
          %355 = sbr.rel (%p353) target = $region48
        $region47: #{basic_block_forward.3} parent=39 // pred_region
          %s356 = smul.u32 8, %s24
          %p357 = scmp.lt.s32.totalorder %s356, 15
          %s358 = scalar_select %p357, %s356, 15
          %s359 = smul.addr %s358, 4
          %s360 = scalar_lea.vmem %s4, %s359
          %s361 = smul.u32 8, %s24
        $region48: #{basic_block_forward.3} parent=39 // pred_fallthru
          _
      $region40: #{basic_block_forward.3} parent=5 // pred_fallthru
        _
      %p362 = scmp.le.s32.totalorder 1, %s17
      %p363 = scmp.lt.s32.totalorder %s17, 3
      %p364 = pnand %p362, %p363
      %p365 = pneg %p364
      // Predicated region
      $region49: #{basic_block_forward.3} parent=5 // pred_check
        _
      $region50: #{basic_block_forward.3} parent=5 // pred_check_branch
        %367 = sbr.rel (%p364) target = $region52
      $region51: #{basic_block_forward.3} parent=5 // pred_region
        %s368 = ssub.s32 %s17, 1
        %s369 = smul.u32 8, %s27
        %s370 = smul.u32 2, %s29
        %p371 = scmp.lt.s32.totalorder %s369, 15
        %s372 = scalar_select %p371, %s369, 15
        %p373 = scmp.lt.s32.totalorder %s370, 1
        %s374 = scalar_select %p373, %s370, 1
        %s375 = smul.addr %s372, 2
        %s376 = sadd.s32 %s374, %s375
        %s377 = smul.addr %s376, 4
        %s378 = scalar_lea.vmem %s0, %s377
        %p379 = pneg %p64
        %p380 = pneg %p61
        %s381 = smul.u32 32, %s29
        %p382 = scmp.lt.s32.totalorder %s381, 31
        %s383 = scalar_select %p382, %s381, 31
        %p384 = scmp.lt.s32.totalorder %s28, 0
        %s385 = scalar_select %p384, %s28, 0
        %s386 = sadd.s32 %s385, %s383
        %s387 = smul.addr %s386, 4
        %s388 = scalar_lea.vmem %s1, %s387
        %p389 = pneg %p92
        %p390 = pneg %p89
        %p391 = scmp.lt.s32.totalorder %s28, 0
        %s392 = scalar_select %p391, %s28, 0
        %s393 = scalar_lea.vmem %s2, %s392
        %p394 = pneg %p118
        %p395 = pneg %p115
        %p396 = scmp.lt.s32.totalorder %s28, 0
        %s397 = scalar_select %p396, %s28, 0
        %s398 = scalar_lea.vmem %s3, %s397
        %p399 = pneg %p144
        %p400 = pneg %p141
        %s401 = smul.u32 8, %s27
        %p402 = scmp.lt.s32.totalorder %s401, 15
        %s403 = scalar_select %p402, %s401, 15
        %s404 = smul.addr %s403, 4
        %s405 = scalar_lea.vmem %s4, %s404
        %p406 = pneg %p170
        %p407 = pneg %p167
        %p408 = scmp.lt.s32.totalorder %s28, 0
        %s409 = scalar_select %p408, %s28, 0
        %s410 = smul.addr %s409, 4
        %s411 = scalar_lea.vmem %s5, %s410
        %p412 = pneg %p196
        %p413 = pneg %p193
        %p414 = scmp.lt.s32.totalorder %s28, 0
        %s415 = scalar_select %p414, %s28, 0
        %s416 = scalar_lea.vmem %s6, %s415
        %p417 = pneg %p222
        %p418 = pneg %p219
        %p419 = scmp.lt.s32.totalorder %s28, 0
        %s420 = scalar_select %p419, %s28, 0
        %s421 = scalar_lea.vmem %s7, %s420
        %p422 = pneg %p248
        %p423 = pneg %p245
        %p424 = pneg %p276
        %p425 = pneg %p273
        %s426 = sand.u32 %s263, 1
        %s427 = scalar_lea.sflag [#allocation3], %s426
        %s428 = sand.u32 %s263, 1
        %s429 = smul.addr %s428, 64
        %s430 = scalar_lea.vmem [#allocation2], %s429
        %s431 = smul.u32 8, %s27
        %s432 = smul.u32 2, %s29
        %p433 = scmp.lt.s32.totalorder %s431, 15
        %s434 = scalar_select %p433, %s431, 15
        %p435 = scmp.lt.s32.totalorder %s432, 1
        %s436 = scalar_select %p435, %s432, 1
        %s437 = smul.addr %s434, 2
        %s438 = sadd.s32 %s436, %s437
        %s439 = smul.addr %s438, 4
        %s440 = scalar_lea.vmem %s0, %s439
        %s441 = smul.u32 8, %s27
        %s442 = smul.u32 2, %s29
        %s443 = smul.u32 32, %s29
        %p444 = scmp.lt.s32.totalorder %s443, 31
        %s445 = scalar_select %p444, %s443, 31
        %p446 = scmp.lt.s32.totalorder %s28, 0
        %s447 = scalar_select %p446, %s28, 0
        %s448 = sadd.s32 %s447, %s445
        %s449 = smul.addr %s448, 4
        %s450 = scalar_lea.vmem %s1, %s449
        %s451 = smul.u32 32, %s29
        %p452 = scmp.lt.s32.totalorder %s28, 0
        %s453 = scalar_select %p452, %s28, 0
        %s454 = scalar_lea.vmem %s2, %s453
        %p455 = scmp.lt.s32.totalorder %s28, 0
        %s456 = scalar_select %p455, %s28, 0
        %s457 = scalar_lea.vmem %s3, %s456
        %s458 = smul.u32 8, %s27
        %p459 = scmp.lt.s32.totalorder %s458, 15
        %s460 = scalar_select %p459, %s458, 15
        %s461 = smul.addr %s460, 4
        %s462 = scalar_lea.vmem %s4, %s461
        %s463 = smul.u32 8, %s27
        %p464 = scmp.lt.s32.totalorder %s28, 0
        %s465 = scalar_select %p464, %s28, 0
        %s466 = smul.addr %s465, 4
        %s467 = scalar_lea.vmem %s5, %s466
        %p468 = scmp.lt.s32.totalorder %s28, 0
        %s469 = scalar_select %p468, %s28, 0
        %s470 = scalar_lea.vmem %s6, %s469
        %p471 = scmp.lt.s32.totalorder %s28, 0
        %s472 = scalar_select %p471, %s28, 0
        %s473 = scalar_lea.vmem %s7, %s472
        %s474 = smul.u32 8, %s27
        %v475 = vld [vmem:[%s440] sm:$0xff]
        %v476 = vld [vmem:[%s440 + $0x8] sm:$0xff]
        %v477 = vld [vmem:[%s440 + $0x10] sm:$0xff]
        %v478 = vld [vmem:[%s440 + $0x18] sm:$0xff]
        %v479 = vld [vmem:[%s440 + $0x20] sm:$0xff]
        %v480 = vld [vmem:[%s440 + $0x28] sm:$0xff]
        %v481 = vld [vmem:[%s440 + $0x30] sm:$0xff]
        %v482 = vld [vmem:[%s440 + $0x38] sm:$0xff]
        %v483 = vld [vmem:[%s450] sm:$0xf]
        %v484 = vld [vmem:[%s450 + $0x4] sm:$0xf]
        %v485 = vld [vmem:[%s450 + $0x8] sm:$0xf]
        %v486 = vld [vmem:[%s450 + $0xc] sm:$0xf]
        %v487 = vld [vmem:[%s450 + $0x10] sm:$0xf]
        %v488 = vld [vmem:[%s450 + $0x14] sm:$0xf]
        %v489 = vld [vmem:[%s450 + $0x18] sm:$0xf]
        %v490 = vld [vmem:[%s450 + $0x1c] sm:$0xf]
        %v491 = vld [vmem:[%s450 + $0x20] sm:$0xf]
        %v492 = vld [vmem:[%s450 + $0x24] sm:$0xf]
        %v493 = vld [vmem:[%s450 + $0x28] sm:$0xf]
        %v494 = vld [vmem:[%s450 + $0x2c] sm:$0xf]
        %v495 = vld [vmem:[%s450 + $0x30] sm:$0xf]
        %v496 = vld [vmem:[%s450 + $0x34] sm:$0xf]
        %v497 = vld [vmem:[%s450 + $0x38] sm:$0xf]
        %v498 = vld [vmem:[%s450 + $0x3c] sm:$0xf]
        %v499 = vld [vmem:[%s450 + $0x40] sm:$0xf]
        %v500 = vld [vmem:[%s450 + $0x44] sm:$0xf]
        %v501 = vld [vmem:[%s450 + $0x48] sm:$0xf]
        %v502 = vld [vmem:[%s450 + $0x4c] sm:$0xf]
        %v503 = vld [vmem:[%s450 + $0x50] sm:$0xf]
        %v504 = vld [vmem:[%s450 + $0x54] sm:$0xf]
        %v505 = vld [vmem:[%s450 + $0x58] sm:$0xf]
        %v506 = vld [vmem:[%s450 + $0x5c] sm:$0xf]
        %v507 = vld [vmem:[%s450 + $0x60] sm:$0xf]
        %v508 = vld [vmem:[%s450 + $0x64] sm:$0xf]
        %v509 = vld [vmem:[%s450 + $0x68] sm:$0xf]
        %v510 = vld [vmem:[%s450 + $0x6c] sm:$0xf]
        %v511 = vld [vmem:[%s450 + $0x70] sm:$0xf]
        %v512 = vld [vmem:[%s450 + $0x74] sm:$0xf]
        %v513 = vld [vmem:[%s450 + $0x78] sm:$0xf]
        %v514 = vld [vmem:[%s450 + $0x7c] sm:$0xf]
        %v523 = vunpack.c.l.b16 %v475
        %v524 = vunpack.c.h.b16 %v475
        %v525 = vunpack.c.l.b16 %v476
        %v526 = vunpack.c.h.b16 %v476
        %v527 = vunpack.c.l.b16 %v477
        %v528 = vunpack.c.h.b16 %v477
        %v529 = vunpack.c.l.b16 %v478
        %v530 = vunpack.c.h.b16 %v478
        %v531 = vunpack.c.l.b16 %v479
        %v532 = vunpack.c.h.b16 %v479
        %v533 = vunpack.c.l.b16 %v480
        %v534 = vunpack.c.h.b16 %v480
        %v535 = vunpack.c.l.b16 %v481
        %v536 = vunpack.c.h.b16 %v481
        %v537 = vunpack.c.l.b16 %v482
        %v538 = vunpack.c.h.b16 %v482
        %v539 = vpack.c.b16 %v525, %v523
        %v540 = vpack.c.b16 %v526, %v524
        %v541 = vpack.c.b16 %v529, %v527
        %v542 = vpack.c.b16 %v530, %v528
        %v543 = vpack.c.b16 %v533, %v531
        %v544 = vpack.c.b16 %v534, %v532
        %v545 = vpack.c.b16 %v537, %v535
        %v546 = vpack.c.b16 %v538, %v536
        %v587 = vunpack.c.l.b16 %v483
        %v588 = vunpack.c.l.b16 %v484
        %v589 = vunpack.c.l.b16 %v485
        %v590 = vunpack.c.l.b16 %v486
        %v591 = vunpack.c.l.b16 %v487
        %v592 = vunpack.c.l.b16 %v488
        %v593 = vunpack.c.l.b16 %v489
        %v594 = vunpack.c.l.b16 %v490
        %v595 = vunpack.c.l.b16 %v491
        %v596 = vunpack.c.l.b16 %v492
        %v597 = vunpack.c.l.b16 %v493
        %v598 = vunpack.c.l.b16 %v494
        %v599 = vunpack.c.l.b16 %v495
        %v600 = vunpack.c.l.b16 %v496
        %v601 = vunpack.c.l.b16 %v497
        %v602 = vunpack.c.l.b16 %v498
        %v603 = vunpack.c.l.b16 %v499
        %v604 = vunpack.c.l.b16 %v500
        %v605 = vunpack.c.l.b16 %v501
        %v606 = vunpack.c.l.b16 %v502
        %v607 = vunpack.c.l.b16 %v503
        %v608 = vunpack.c.l.b16 %v504
        %v609 = vunpack.c.l.b16 %v505
        %v610 = vunpack.c.l.b16 %v506
        %v611 = vunpack.c.l.b16 %v507
        %v612 = vunpack.c.l.b16 %v508
        %v613 = vunpack.c.l.b16 %v509
        %v614 = vunpack.c.l.b16 %v510
        %v615 = vunpack.c.l.b16 %v511
        %v616 = vunpack.c.l.b16 %v512
        %v617 = vunpack.c.l.b16 %v513
        %v618 = vunpack.c.l.b16 %v514
        %v619 = vpack.c.b16 %v588, %v587
        %v620 = vpack.c.b16 %v590, %v589
        %v621 = vpack.c.b16 %v592, %v591
        %v622 = vpack.c.b16 %v594, %v593
        %v623 = vpack.c.b16 %v596, %v595
        %v624 = vpack.c.b16 %v598, %v597
        %v625 = vpack.c.b16 %v600, %v599
        %v626 = vpack.c.b16 %v602, %v601
        %v627 = vpack.c.b16 %v604, %v603
        %v628 = vpack.c.b16 %v606, %v605
        %v629 = vpack.c.b16 %v608, %v607
        %v630 = vpack.c.b16 %v610, %v609
        %v631 = vpack.c.b16 %v612, %v611
        %v632 = vpack.c.b16 %v614, %v613
        %v633 = vpack.c.b16 %v616, %v615
        %v634 = vpack.c.b16 %v618, %v617
        %651 = vmatpush.bf16.msra.mxu0 %v626
        %652 = vmatpush.bf16.msra.mxu0 %v625
        %653 = vmatpush.bf16.msra.mxu0 %v624
        %654 = vmatpush.bf16.msra.mxu0 %v623
        %655 = vmatpush.bf16.msra.mxu0 %v622
        %656 = vmatpush.bf16.msra.mxu0 %v621
        %657 = vmatpush.bf16.msra.mxu0 %v620
        %658 = vmatpush.bf16.msra.mxu0 %v619
        %659 = vmatmul.bf16.gmra.mxu0 %v539
        %v660 = vpop.f32.mrf.mxu0
        %v661 = vadd.f32 0.0, %v660
        %v662 = vpop.f32.mrf.mxu0
        %v663 = vadd.f32 0.0, %v662
        %664 = vmatmul.bf16.gmra.mxu0 %v541
        %v665 = vpop.f32.mrf.mxu0
        %v666 = vadd.f32 0.0, %v665
        %v667 = vpop.f32.mrf.mxu0
        %v668 = vadd.f32 0.0, %v667
        %669 = vmatmul.bf16.gmra.mxu0 %v543
        %v670 = vpop.f32.mrf.mxu0
        %v671 = vadd.f32 0.0, %v670
        %v672 = vpop.f32.mrf.mxu0
        %v673 = vadd.f32 0.0, %v672
        %674 = vmatmul.bf16.gmra.mxu0 %v545
        %v675 = vpop.f32.mrf.mxu0
        %v676 = vadd.f32 0.0, %v675
        %v677 = vpop.f32.mrf.mxu0
        %v678 = vadd.f32 0.0, %v677
        %679 = vdwg.mxu0
        %680 = vmatpush.bf16.msra.mxu0 %v634
        %681 = vmatpush.bf16.msra.mxu0 %v633
        %682 = vmatpush.bf16.msra.mxu0 %v632
        %683 = vmatpush.bf16.msra.mxu0 %v631
        %684 = vmatpush.bf16.msra.mxu0 %v630
        %685 = vmatpush.bf16.msra.mxu0 %v629
        %686 = vmatpush.bf16.msra.mxu0 %v628
        %687 = vmatpush.bf16.msra.mxu0 %v627
        %688 = vmatmul.bf16.gmra.mxu0 %v540
        %v689 = vpop.f32.mrf.mxu0
        %v690 = vadd.f32 %v661, %v689
        %v691 = vpop.f32.mrf.mxu0
        %v692 = vadd.f32 %v663, %v691
        %693 = vmatmul.bf16.gmra.mxu0 %v542
        %v694 = vpop.f32.mrf.mxu0
        %v695 = vadd.f32 %v666, %v694
        %v696 = vpop.f32.mrf.mxu0
        %v697 = vadd.f32 %v668, %v696
        %698 = vmatmul.bf16.gmra.mxu0 %v544
        %v699 = vpop.f32.mrf.mxu0
        %v700 = vadd.f32 %v671, %v699
        %v701 = vpop.f32.mrf.mxu0
        %v702 = vadd.f32 %v673, %v701
        %703 = vmatmul.bf16.gmra.mxu0 %v546
        %v704 = vpop.f32.mrf.mxu0
        %v705 = vadd.f32 %v676, %v704
        %v706 = vpop.f32.mrf.mxu0
        %v707 = vadd.f32 %v678, %v706
        %708 = vdwg.mxu0
        %v709 = vld [vmem:[%s454] sm:$0x1]
        %v711 = vperm.slane %v709, 0
        %v713 = vmul.f32 %v690, %v711
        %v714 = vmul.f32 %v692, %v711
        %v715 = vmul.f32 %v695, %v711
        %v716 = vmul.f32 %v697, %v711
        %v717 = vmul.f32 %v700, %v711
        %v718 = vmul.f32 %v702, %v711
        %v719 = vmul.f32 %v705, %v711
        %v720 = vmul.f32 %v707, %v711
        %v721 = vld [vmem:[%s457] sm:$0x1]
        %v723 = vperm.slane %v721, 0
        %v725 = vadd.f32 %v713, %v723
        %v726 = vadd.f32 %v714, %v723
        %v727 = vadd.f32 %v715, %v723
        %v728 = vadd.f32 %v716, %v723
        %v729 = vadd.f32 %v717, %v723
        %v730 = vadd.f32 %v718, %v723
        %v731 = vadd.f32 %v719, %v723
        %v732 = vadd.f32 %v720, %v723
        %v733 = vld [vmem:[%s462] sm:$0xf]
        %v734 = vld [vmem:[%s462 + $0x4] sm:$0xf]
        %v735 = vld [vmem:[%s462 + $0x8] sm:$0xf]
        %v736 = vld [vmem:[%s462 + $0xc] sm:$0xf]
        %v737 = vld [vmem:[%s462 + $0x10] sm:$0xf]
        %v738 = vld [vmem:[%s462 + $0x14] sm:$0xf]
        %v739 = vld [vmem:[%s462 + $0x18] sm:$0xf]
        %v740 = vld [vmem:[%s462 + $0x1c] sm:$0xf]
        %v741 = vld [vmem:[%s467] sm:$0xf]
        %v742 = vld [vmem:[%s467 + $0x4] sm:$0xf]
        %v743 = vld [vmem:[%s467 + $0x8] sm:$0xf]
        %v744 = vld [vmem:[%s467 + $0xc] sm:$0xf]
        %v745 = vld [vmem:[%s467 + $0x10] sm:$0xf]
        %v746 = vld [vmem:[%s467 + $0x14] sm:$0xf]
        %v747 = vld [vmem:[%s467 + $0x18] sm:$0xf]
        %v748 = vld [vmem:[%s467 + $0x1c] sm:$0xf]
        %v749 = vld [vmem:[%s467 + $0x20] sm:$0xf]
        %v750 = vld [vmem:[%s467 + $0x24] sm:$0xf]
        %v751 = vld [vmem:[%s467 + $0x28] sm:$0xf]
        %v752 = vld [vmem:[%s467 + $0x2c] sm:$0xf]
        %v753 = vld [vmem:[%s467 + $0x30] sm:$0xf]
        %v754 = vld [vmem:[%s467 + $0x34] sm:$0xf]
        %v755 = vld [vmem:[%s467 + $0x38] sm:$0xf]
        %v756 = vld [vmem:[%s467 + $0x3c] sm:$0xf]
        %v765 = vunpack.c.l.b16 %v733
        %v766 = vunpack.c.l.b16 %v734
        %v767 = vunpack.c.l.b16 %v735
        %v768 = vunpack.c.l.b16 %v736
        %v769 = vunpack.c.l.b16 %v737
        %v770 = vunpack.c.l.b16 %v738
        %v771 = vunpack.c.l.b16 %v739
        %v772 = vunpack.c.l.b16 %v740
        %v773 = vpack.c.b16 %v766, %v765
        %v774 = vpack.c.b16 %v768, %v767
        %v775 = vpack.c.b16 %v770, %v769
        %v776 = vpack.c.b16 %v772, %v771
        %v797 = vunpack.c.l.b16 %v741
        %v798 = vunpack.c.l.b16 %v742
        %v799 = vunpack.c.l.b16 %v743
        %v800 = vunpack.c.l.b16 %v744
        %v801 = vunpack.c.l.b16 %v745
        %v802 = vunpack.c.l.b16 %v746
        %v803 = vunpack.c.l.b16 %v747
        %v804 = vunpack.c.l.b16 %v748
        %v805 = vunpack.c.l.b16 %v749
        %v806 = vunpack.c.l.b16 %v750
        %v807 = vunpack.c.l.b16 %v751
        %v808 = vunpack.c.l.b16 %v752
        %v809 = vunpack.c.l.b16 %v753
        %v810 = vunpack.c.l.b16 %v754
        %v811 = vunpack.c.l.b16 %v755
        %v812 = vunpack.c.l.b16 %v756
        %v813 = vpack.c.b16 %v798, %v797
        %v814 = vpack.c.b16 %v800, %v799
        %v815 = vpack.c.b16 %v802, %v801
        %v816 = vpack.c.b16 %v804, %v803
        %v817 = vpack.c.b16 %v806, %v805
        %v818 = vpack.c.b16 %v808, %v807
        %v819 = vpack.c.b16 %v810, %v809
        %v820 = vpack.c.b16 %v812, %v811
        %829 = vmatpush.bf16.msra.mxu0 %v820
        %830 = vmatpush.bf16.msra.mxu0 %v819
        %831 = vmatpush.bf16.msra.mxu0 %v818
        %832 = vmatpush.bf16.msra.mxu0 %v817
        %833 = vmatpush.bf16.msra.mxu0 %v816
        %834 = vmatpush.bf16.msra.mxu0 %v815
        %835 = vmatpush.bf16.msra.mxu0 %v814
        %836 = vmatpush.bf16.msra.mxu0 %v813
        %837 = vmatmul.bf16.gmra.mxu0 %v773
        %v838 = vpop.f32.mrf.mxu0
        %v839 = vadd.f32 0.0, %v838
        %v840 = vpop.f32.mrf.mxu0
        %v841 = vadd.f32 0.0, %v840
        %842 = vmatmul.bf16.gmra.mxu0 %v774
        %v843 = vpop.f32.mrf.mxu0
        %v844 = vadd.f32 0.0, %v843
        %v845 = vpop.f32.mrf.mxu0
        %v846 = vadd.f32 0.0, %v845
        %847 = vmatmul.bf16.gmra.mxu0 %v775
        %v848 = vpop.f32.mrf.mxu0
        %v849 = vadd.f32 0.0, %v848
        %v850 = vpop.f32.mrf.mxu0
        %v851 = vadd.f32 0.0, %v850
        %852 = vmatmul.bf16.gmra.mxu0 %v776
        %v853 = vpop.f32.mrf.mxu0
        %v854 = vadd.f32 0.0, %v853
        %v855 = vpop.f32.mrf.mxu0
        %v856 = vadd.f32 0.0, %v855
        %857 = vdwg.mxu0
        %v858 = vld [vmem:[%s470] sm:$0x1]
        %v860 = vperm.slane %v858, 0
        %v862 = vmul.f32 %v839, %v860
        %v863 = vmul.f32 %v841, %v860
        %v864 = vmul.f32 %v844, %v860
        %v865 = vmul.f32 %v846, %v860
        %v866 = vmul.f32 %v849, %v860
        %v867 = vmul.f32 %v851, %v860
        %v868 = vmul.f32 %v854, %v860
        %v869 = vmul.f32 %v856, %v860
        %v870 = vld [vmem:[%s473] sm:$0x1]
        %v872 = vperm.slane %v870, 0
        %v874 = vadd.f32 %v862, %v872
        %v875 = vadd.f32 %v863, %v872
        %v876 = vadd.f32 %v864, %v872
        %v877 = vadd.f32 %v865, %v872
        %v878 = vadd.f32 %v866, %v872
        %v879 = vadd.f32 %v867, %v872
        %v880 = vadd.f32 %v868, %v872
        %v881 = vadd.f32 %v869, %v872
        %v882 = vadd.f32 %v725, %v874
        %v883 = vadd.f32 %v726, %v875
        %v884 = vadd.f32 %v727, %v876
        %v885 = vadd.f32 %v728, %v877
        %v886 = vadd.f32 %v729, %v878
        %v887 = vadd.f32 %v730, %v879
        %v888 = vadd.f32 %v731, %v880
        %v889 = vadd.f32 %v732, %v881
        %v890 = vmax.f32 %v882, 0.0
        %v891 = vmax.f32 %v883, 0.0
        %v892 = vmax.f32 %v884, 0.0
        %v893 = vmax.f32 %v885, 0.0
        %v894 = vmax.f32 %v886, 0.0
        %v895 = vmax.f32 %v887, 0.0
        %v896 = vmax.f32 %v888, 0.0
        %v897 = vmax.f32 %v889, 0.0
        %898 = vst [vmem:[%s430] sm:$0xff] %v890
        %899 = vst [vmem:[%s430 + $0x8] sm:$0xff] %v891
        %900 = vst [vmem:[%s430 + $0x10] sm:$0xff] %v892
        %901 = vst [vmem:[%s430 + $0x18] sm:$0xff] %v893
        %902 = vst [vmem:[%s430 + $0x20] sm:$0xff] %v894
        %903 = vst [vmem:[%s430 + $0x28] sm:$0xff] %v895
        %904 = vst [vmem:[%s430 + $0x30] sm:$0xff] %v896
        %905 = vst [vmem:[%s430 + $0x38] sm:$0xff] %v897
        %s906 = sand.u32 %s263, 1
        %s907 = scalar_lea.sflag [#allocation3], %s906
        %s908 = sand.u32 %s263, 1
        %s909 = smul.addr %s908, 64
        %s910 = scalar_lea.vmem [#allocation2], %s909
        // Predicated region
        $region53: #{basic_block_forward.3} parent=51 // pred_check
          %p911 = pneg %p273
        $region54: #{basic_block_forward.3} parent=51 // pred_check_branch
          %913 = sbr.rel (%p911) target = $region56
        $region55: #{basic_block_forward.3} parent=51 // pred_region
          %s914 = smul.u32 8, %s27
          %916 = vsyncadd %s907, 0
          %s917 = sadd.s32 %s28, %s914
          %s918 = smul.addr %s917, 8
          %s919 = scalar_lea.hbm %s8, %s918
          %s920 = sshll.u32 %s910, 4
          %s921 = int_to_ptr.vmem [resolvable:$true] %s920
          %s922 = sshll.u32 %s919, 4
          %s923 = int_to_ptr.hbm [resolvable:$true] %s922
          %928 = dma.vmem_to_hbm [thread:$0]  %s921, 1024, %s923, %s907, 128, 128, 8
        $region56: #{basic_block_forward.3} parent=51 // pred_fallthru
          _
      $region52: #{basic_block_forward.3} parent=5 // pred_fallthru
        _
      %p929 = scmp.le.s32.totalorder 2, %s17
      // Predicated region
      $region57: #{basic_block_forward.3} parent=5 // pred_check
        %p930 = pneg %p929
      $region58: #{basic_block_forward.3} parent=5 // pred_check_branch
        %932 = sbr.rel (%p930) target = $region60
      $region59: #{basic_block_forward.3} parent=5 // pred_region
        %s933 = ssub.s32 %s17, 2
        // Predicated region
        $region61: #{basic_block_forward.3} parent=59 // pred_check
          %p934 = pneg %p279
        $region62: #{basic_block_forward.3} parent=59 // pred_check_branch
          %936 = sbr.rel (%p934) target = $region64
        $region63: #{basic_block_forward.3} parent=59 // pred_region
          %s937 = sand.u32 %s264, 1
          %s938 = scalar_lea.sflag [#allocation3], %s937
          %s939 = sand.u32 %s264, 1
          %s940 = smul.addr %s939, 64
          %s941 = scalar_lea.vmem [#allocation2], %s940
          %943 = dma.done %s938, 1024
        $region64: #{basic_block_forward.3} parent=59 // pred_fallthru
          _
      $region60: #{basic_block_forward.3} parent=5 // pred_fallthru
        _
    $region6: #{basic_block_forward.3} parent=1 // loop_footer
      %s21 = sadd.s32 1, %s17
    $region7: #{basic_block_forward.3} parent=1 // loop_footer_branch
      %16 = sbr.rel target = $region3
    $region8: #{basic_block_forward.3} parent=1 // loop_exit
      _
    %944 = vsyncpa [#allocation3], 1
    %s945 = scalar_lea.sflag [#allocation3], 1
    %946 = vsyncpa %s945, 1

</llo_original>
